<compile_context>
chip_gen: v7x
topology: tpu7x:2x2x1
jax: 0.10.0
libtpu: 0.0.40
codegen_flags: <defaults>
</compile_context>

<pallas_src>
import functools

import jax
import jax.numpy as jnp
from jax.experimental import pallas as pl
from jax.experimental.pallas import tpu as pltpu

LANES = 128


def _round_up(x, m):
    return ((x + m - 1) // m) * m


def _pack_weight_rows(named_arrays):
    """Pack (name, (r,128) array) pairs into one f32 slab, 8-row aligned."""
    seg = {}
    parts = []
    row = 0
    for name, arr in named_arrays:
        assert arr.ndim == 2 and arr.shape[1] == LANES, (name, arr.shape)
        r = arr.shape[0]
        seg[name] = (row, r)
        parts.append(arr.astype(jnp.float32))
        pad = (-r) % 8
        if pad:
            parts.append(jnp.zeros((pad, LANES), jnp.float32))
        row += r + pad
    return jnp.concatenate(parts, axis=0), seg


def net_kernel(ms_ref, pan_ref, w_ref, out_ref, *, seg):
    """One batch tile: 5 MXU matmuls, all weights sliced from one VMEM slab.

    ms_ref : (TB, Cms*H*W)   f32
    pan_ref: (TB, Cpan*Hp*Wp) f32
    w_ref  : (R, 128)         f32 packed weight slab (grid-invariant)
    out_ref: (TB, 128)        f32 (cols >= num_classes are zero-padded)
    """
    def W(name):
        off, n = seg[name]            # static Python ints -> zero-cost view
        return w_ref[off:off + n, :]

    ms = ms_ref[...]
    pan = pan_ref[...]

    # Synthetic backbone branches: mean-pool + Linear + ReLU, with the
    # 1/(H*W) mean scale folded into the (C*H*W, 128) projection weights.
    out_ms = jnp.maximum(
        jnp.dot(ms, W("wms"), preferred_element_type=jnp.float32) + W("bms"),
        0.0)                                                   # (TB, 128)
    out_pan = jnp.maximum(
        jnp.dot(pan, W("wpan"), preferred_element_type=jnp.float32) + W("bpan"),
        0.0)                                                   # (TB, 128)

    # Head: cat([out_ms, out_pan], 1) -> Linear(256,128) -> ReLU -> Linear(128,C)
    # [A|B] @ W1 == A @ W1[:128] + B @ W1[128:]  (exact split matmul).
    h = jnp.maximum(
        jnp.dot(out_ms, W("w1a"), preferred_element_type=jnp.float32)
        + jnp.dot(out_pan, W("w1b"), preferred_element_type=jnp.float32)
        + W("b1"),
        0.0)                                                   # (TB, 128)

    out_ref[...] = (jnp.dot(h, W("w2"), preferred_element_type=jnp.float32)
                    + W("b2"))                                 # (TB, 128)


def net_forward(ms, pan, params):
    """ms: (B, Cms, H, W) f32 NCHW; pan: (B, Cpan, Hp, Wp) f32 NCHW."""
    B, Cms, H, W = ms.shape
    _, Cpan, Hp, Wp = pan.shape
    HWm, HWp = H * W, Hp * Wp
    num_classes = params["b2"].shape[-1]

    # ---- lane/sublane-dense inputs: (B_pad, C*H*W), batch padded to sublanes
    TB = min(128, _round_up(B, 8))
    B_pad = _round_up(B, TB)

    def flat_pad(x, c, hw):
        x2 = x.reshape(B, c * hw).astype(jnp.float32)
        if B_pad != B:
            x2 = jnp.pad(x2, ((0, B_pad - B), (0, 0)))
        return x2

    ms2 = flat_pad(ms, Cms, HWm)
    pan2 = flat_pad(pan, Cpan, HWp)

    # ---- host-side weight prep: fold mean into projections, lane-pad the head
    w_ms_full = jnp.repeat(params["wms"].astype(jnp.float32), HWm, axis=0) / HWm
    w_pan_full = jnp.repeat(params["wpan"].astype(jnp.float32), HWp, axis=0) / HWp
    w2_pad = jnp.pad(params["w2"].astype(jnp.float32),
                     ((0, 0), (0, LANES - num_classes)))
    b2_pad = jnp.pad(params["b2"].astype(jnp.float32),
                     ((0, 0), (0, LANES - num_classes)))

    w_slab, seg = _pack_weight_rows([
        ("wms", w_ms_full),
        ("wpan", w_pan_full),
        ("bms", params["bms"].astype(jnp.float32)),
        ("bpan", params["bpan"].astype(jnp.float32)),
        ("w1a", params["w1a"].astype(jnp.float32)),
        ("w1b", params["w1b"].astype(jnp.float32)),
        ("b1", params["b1"].astype(jnp.float32)),
        ("w2", w2_pad),
        ("b2", b2_pad),
    ])
    R = w_slab.shape[0]

    kernel = functools.partial(net_kernel, seg=seg)
    grid = (B_pad // TB,)

    out = pl.pallas_call(
        kernel,
        out_shape=jax.ShapeDtypeStruct((B_pad, LANES), jnp.float32),
        grid_spec=pltpu.PrefetchScalarGridSpec(
            num_scalar_prefetch=0,
            grid=grid,
            in_specs=[
                pl.BlockSpec((TB, Cms * HWm), lambda i: (i, 0)),
                pl.BlockSpec((TB, Cpan * HWp), lambda i: (i, 0)),
                pl.BlockSpec((R, LANES), lambda i: (0, 0)),  # grid-invariant weights
            ],
            out_specs=pl.BlockSpec((TB, LANES), lambda i: (i, 0)),
        ),
        compiler_params=pltpu.CompilerParams(
            dimension_semantics=("parallel",),          # megacore over batch tiles
            vmem_limit_bytes=32 * 1024 * 1024,          # explicit budget (safe on v7x)
        ),
    )(ms2, pan2, w_slab)

    return out[:B, :num_classes]


def init_params(key, cms, cpan, num_classes=7):
    ks = jax.random.split(key, 8)
    s = 0.05
    return {
        # synthetic backbone projections (stand-in for Model)
        "wms":  s * jax.random.normal(ks[0], (cms, 128), jnp.float32),
        "bms":  jnp.zeros((1, 128), jnp.float32),
        "wpan": s * jax.random.normal(ks[1], (cpan, 128), jnp.float32),
        "bpan": jnp.zeros((1, 128), jnp.float32),
        # add_block: Linear(256,128) split along its input dim, ReLU, Linear(128,C)
        "w1a":  s * jax.random.normal(ks[2], (128, 128), jnp.float32),
        "w1b":  s * jax.random.normal(ks[3], (128, 128), jnp.float32),
        "b1":   s * jax.random.normal(ks[4], (1, 128), jnp.float32),
        "w2":   s * jax.random.normal(ks[5], (128, num_classes), jnp.float32),
        "b2":   s * jax.random.normal(ks[6], (1, num_classes), jnp.float32),
    }


if __name__ == "__main__":
    key = jax.random.PRNGKey(0)
    k_ms, k_pan, k_p = jax.random.split(key, 3)

    # small shapes: ms = 4-band multispectral 16x16, pan = 1-band 64x64 (4x res)
    B, Cms, H, W = 2, 4, 16, 16
    Cpan, Hp, Wp = 1, 64, 64
    num_classes = 7

    ms = jax.random.normal(k_ms, (B, Cms, H, W), jnp.float32)
    pan = jax.random.normal(k_pan, (B, Cpan, Hp, Wp), jnp.float32)
    params = init_params(k_p, Cms, Cpan, num_classes)

    out = net_forward(ms, pan, params)
    out = jax.block_until_ready(out)
    assert out.shape == (B, num_classes), out.shape

    # reference check in plain JAX using the original mean-pool formulation
    pooled_ms = ms.reshape(B, Cms, -1).mean(-1)
    pooled_pan = pan.reshape(B, Cpan, -1).mean(-1)
    o_ms = jnp.maximum(pooled_ms @ params["wms"] + params["bms"], 0.0)
    o_pan = jnp.maximum(pooled_pan @ params["wpan"] + params["bpan"], 0.0)
    feature = jnp.concatenate([o_ms, o_pan], axis=1)
    w1 = jnp.concatenate([params["w1a"], params["w1b"]], axis=0)
    h = jnp.maximum(feature @ w1 + params["b1"], 0.0)
    ref = h @ params["w2"] + params["b2"]
    assert jnp.allclose(out, ref, atol=1e-4, rtol=1e-4), (
        jnp.max(jnp.abs(out - ref)))

    print("KERNEL_OK")
</pallas_src>

<mosaic_0001>
module attributes {stable_mosaic.version = 11 : i64} {
  func.func @net_kernel(%arg0: i32, %arg1: memref<8x1024xf32, #tpu.memory_space<vmem>>, %arg2: memref<8x4096xf32, #tpu.memory_space<vmem>>, %arg3: memref<5536x128xf32, #tpu.memory_space<vmem>>, %arg4: memref<8x128xf32, #tpu.memory_space<vmem>>) attributes {dimension_semantics = [#tpu.dimension_semantics<parallel>], iteration_bounds = array<i64: 1>, scalar_prefetch = 0 : i64, scratch_operands = 0 : i64, tpu.core_type = #tpu.core_type<tc>, window_params = [{transform_indices = @transform_0, window_bounds = array<i64: 8, 1024>}, {transform_indices = @transform_1, window_bounds = array<i64: 8, 4096>}, {pipeline_mode = #tpu.pipeline_mode<synchronous>, transform_indices = @transform_2, window_bounds = array<i64: 5536, 128>}, {transform_indices = @transform_3, window_bounds = array<i64: 8, 128>}]} {
    %c0 = arith.constant 0 : index
    %c0_0 = arith.constant 0 : index
    %0 = vector.load %arg1[%c0, %c0_0] : memref<8x1024xf32, #tpu.memory_space<vmem>>, vector<8x1024xf32>
    %c0_1 = arith.constant 0 : index
    %c0_2 = arith.constant 0 : index
    %1 = vector.load %arg2[%c0_1, %c0_2] : memref<8x4096xf32, #tpu.memory_space<vmem>>, vector<8x4096xf32>
    %c0_3 = arith.constant 0 : index
    %c0_4 = arith.constant 0 : index
    %2 = vector.load %arg3[%c0_3, %c0_4] : memref<5536x128xf32, #tpu.memory_space<vmem>>, vector<1024x128xf32>
    %cst = arith.constant dense<0.000000e+00> : vector<8x128xf32>
    %3 = tpu.matmul %0, %2, %cst {dimension_numbers = #tpu.dot_dimension_numbers<[1], [0], [0], [1], [0, 0, 1, 1], [], []>} : vector<8x1024xf32>, vector<1024x128xf32>, vector<8x128xf32> -> vector<8x128xf32>
    %c5120 = arith.constant 5120 : index
    %c0_5 = arith.constant 0 : index
    %4 = vector.load %arg3[%c5120, %c0_5] : memref<5536x128xf32, #tpu.memory_space<vmem>>, vector<1x128xf32>
    %5 = vector.broadcast %4 : vector<1x128xf32> to vector<8x128xf32>
    %6 = arith.addf %3, %5 : vector<8x128xf32>
    %cst_6 = arith.constant 0.000000e+00 : f32
    %7 = vector.broadcast %cst_6 : f32 to vector<8x128xf32>
    %8 = arith.maximumf %6, %7 : vector<8x128xf32>
    %c1024 = arith.constant 1024 : index
    %c0_7 = arith.constant 0 : index
    %9 = vector.load %arg3[%c1024, %c0_7] : memref<5536x128xf32, #tpu.memory_space<vmem>>, vector<4096x128xf32>
    %cst_8 = arith.constant dense<0.000000e+00> : vector<8x128xf32>
    %10 = tpu.matmul %1, %9, %cst_8 {dimension_numbers = #tpu.dot_dimension_numbers<[1], [0], [0], [1], [0, 0, 1, 1], [], []>} : vector<8x4096xf32>, vector<4096x128xf32>, vector<8x128xf32> -> vector<8x128xf32>
    %c5128 = arith.constant 5128 : index
    %c0_9 = arith.constant 0 : index
    %11 = vector.load %arg3[%c5128, %c0_9] : memref<5536x128xf32, #tpu.memory_space<vmem>>, vector<1x128xf32>
    %12 = vector.broadcast %11 : vector<1x128xf32> to vector<8x128xf32>
    %13 = arith.addf %10, %12 : vector<8x128xf32>
    %cst_10 = arith.constant 0.000000e+00 : f32
    %14 = vector.broadcast %cst_10 : f32 to vector<8x128xf32>
    %15 = arith.maximumf %13, %14 : vector<8x128xf32>
    %c5136 = arith.constant 5136 : index
    %c0_11 = arith.constant 0 : index
    %16 = vector.load %arg3[%c5136, %c0_11] : memref<5536x128xf32, #tpu.memory_space<vmem>>, vector<128x128xf32>
    %cst_12 = arith.constant dense<0.000000e+00> : vector<8x128xf32>
    %17 = tpu.matmul %8, %16, %cst_12 {dimension_numbers = #tpu.dot_dimension_numbers<[1], [0], [0], [1], [0, 0, 1, 1], [], []>} : vector<8x128xf32>, vector<128x128xf32>, vector<8x128xf32> -> vector<8x128xf32>
    %c5264 = arith.constant 5264 : index
    %c0_13 = arith.constant 0 : index
    %18 = vector.load %arg3[%c5264, %c0_13] : memref<5536x128xf32, #tpu.memory_space<vmem>>, vector<128x128xf32>
    %cst_14 = arith.constant dense<0.000000e+00> : vector<8x128xf32>
    %19 = tpu.matmul %15, %18, %cst_14 {dimension_numbers = #tpu.dot_dimension_numbers<[1], [0], [0], [1], [0, 0, 1, 1], [], []>} : vector<8x128xf32>, vector<128x128xf32>, vector<8x128xf32> -> vector<8x128xf32>
    %20 = arith.addf %17, %19 : vector<8x128xf32>
    %c5392 = arith.constant 5392 : index
    %c0_15 = arith.constant 0 : index
    %21 = vector.load %arg3[%c5392, %c0_15] : memref<5536x128xf32, #tpu.memory_space<vmem>>, vector<1x128xf32>
    %22 = vector.broadcast %21 : vector<1x128xf32> to vector<8x128xf32>
    %23 = arith.addf %20, %22 : vector<8x128xf32>
    %cst_16 = arith.constant 0.000000e+00 : f32
    %24 = vector.broadcast %cst_16 : f32 to vector<8x128xf32>
    %25 = arith.maximumf %23, %24 : vector<8x128xf32>
    %c5400 = arith.constant 5400 : index
    %c0_17 = arith.constant 0 : index
    %26 = vector.load %arg3[%c5400, %c0_17] : memref<5536x128xf32, #tpu.memory_space<vmem>>, vector<128x128xf32>
    %cst_18 = arith.constant dense<0.000000e+00> : vector<8x128xf32>
    %27 = tpu.matmul %25, %26, %cst_18 {dimension_numbers = #tpu.dot_dimension_numbers<[1], [0], [0], [1], [0, 0, 1, 1], [], []>} : vector<8x128xf32>, vector<128x128xf32>, vector<8x128xf32> -> vector<8x128xf32>
    %c5528 = arith.constant 5528 : index
    %c0_19 = arith.constant 0 : index
    %28 = vector.load %arg3[%c5528, %c0_19] : memref<5536x128xf32, #tpu.memory_space<vmem>>, vector<1x128xf32>
    %29 = vector.broadcast %28 : vector<1x128xf32> to vector<8x128xf32>
    %30 = arith.addf %27, %29 : vector<8x128xf32>
    %c0_20 = arith.constant 0 : index
    %c0_21 = arith.constant 0 : index
    %31 = vector.load %arg4[%c0_20, %c0_21] : memref<8x128xf32, #tpu.memory_space<vmem>>, vector<8x128xf32>
    tpu.vector_store %arg4[%c0_20, %c0_21], %30 {strides = array<i32>} : memref<8x128xf32, #tpu.memory_space<vmem>>, vector<8x128xf32>,
    return
  }
  func.func @transform_0(%arg0: i32) -> (i32, i32) {
    %c0_i32 = arith.constant 0 : i32
    %c0_i32_0 = arith.constant 0 : i32
    return %arg0, %c0_i32 : i32, i32
  }
  func.func @transform_1(%arg0: i32) -> (i32, i32) {
    %c0_i32 = arith.constant 0 : i32
    %c0_i32_0 = arith.constant 0 : i32
    return %arg0, %c0_i32 : i32, i32
  }
  func.func @transform_2(%arg0: i32) -> (i32, i32) {
    %c0_i32 = arith.constant 0 : i32
    %c0_i32_0 = arith.constant 0 : i32
    %c0_i32_1 = arith.constant 0 : i32
    return %c0_i32, %c0_i32_0 : i32, i32
  }
  func.func @transform_3(%arg0: i32) -> (i32, i32) {
    %c0_i32 = arith.constant 0 : i32
    %c0_i32_0 = arith.constant 0 : i32
    return %arg0, %c0_i32 : i32, i32
  }
}

</mosaic_0001>

<llo_original>
// kernel: tpu_custom_call.1
$region0: #{tpu_custom_call.1}
  #allocation0 [shape = 'u32[]', space=smem, size = 0x4, offset = 0x4, fixed_abs, tag = 'smem constant byte address 0x4 - core index']
  #allocation1 [shape = 'u32[144,128]{1,0:T(1,128)}', space=vmem, size = 0x12000, scoped, tag = 'internal scratch']
  %s0 = inlined_call_operand.hbm [shape: f32[8,1024], index: 0, kind: input, shape index: {}]
  %s1 = inlined_call_operand.hbm [shape: f32[8,4096], index: 1, kind: input, shape index: {}]
  %s2 = inlined_call_operand.hbm [shape: f32[5536,128], index: 2, kind: input, shape index: {}]
  %s3 = inlined_call_operand.hbm [shape: f32[8,128], index: 3, kind: output, shape index: {}]
  %s4 = sld [smem:[#allocation0]]
  $region34: #{tpu_custom_call.1} parent=0
    _
  %s6 = ssub.s32 1, %s4
  %s7 = scalar_select 0, %s6, %s4
  $region1: #{tpu_custom_call.1} parent=0
    #allocation2 [shape = 'u8[32768]{0}', space=vmem, size = 0x8000, scoped, tag = 'input window, operand 0, single buffered']
    #allocation3 [shape = 's32[1]{0}', space=sflag, size = 0x4, scoped, tag = 'scoped memory for tpu_custom_call.1']
    #allocation4 [shape = 's32[1]{0}', space=sflag, size = 0x4, scoped, tag = 'scoped memory for tpu_custom_call.1']
    #allocation5 [shape = 'u8[131072]{0}', space=vmem, size = 0x20000, scoped, tag = 'input window, operand 1, single buffered']
    #allocation6 [shape = 's32[1]{0}', space=sflag, size = 0x4, scoped, tag = 'scoped memory for tpu_custom_call.1']
    #allocation7 [shape = 'u8[2834432]{0}', space=vmem, size = 0x2b4000, scoped, tag = 'input window, operand 2, single buffered']
    #allocation8 [shape = 'u8[4096]{0}', space=vmem, size = 0x1000, scoped, tag = 'output window, operand 0, single buffered']
    %8 = vsyncpa [#allocation3], 0
    %9 = vsyncpa [#allocation6], 0
    %10 = vsyncpa [#allocation4], 0
    // Predicated region
    $region2: #{tpu_custom_call.1} parent=1 // pred_check
      _
    $region3: #{tpu_custom_call.1} parent=1 // pred_check_branch
      %12 = sbr.rel (0) target = $region5
    $region4: #{tpu_custom_call.1} parent=1 // pred_region
      %s14 = ssub.s32 1024, 1024
      %15 = vsyncadd [#allocation3], %s14
      %s17 = sshll.u32 [#allocation2], 4
      %s18 = int_to_ptr.vmem [resolvable:$true] %s17
      %20 = dma.hbm_to_vmem [thread:$0]  %s0, 1024, %s18, [#allocation3]
    $region5: #{tpu_custom_call.1} parent=1 // pred_fallthru
      _
    // Predicated region
    $region6: #{tpu_custom_call.1} parent=1 // pred_check
      _
    $region7: #{tpu_custom_call.1} parent=1 // pred_check_branch
      %22 = sbr.rel (0) target = $region9
    $region8: #{tpu_custom_call.1} parent=1 // pred_region
      %s24 = ssub.s32 4096, 4096
      %25 = vsyncadd [#allocation6], %s24
      %s27 = sshll.u32 [#allocation5], 4
      %s28 = int_to_ptr.vmem [resolvable:$true] %s27
      %30 = dma.hbm_to_vmem [thread:$0]  %s1, 4096, %s28, [#allocation6]
    $region9: #{tpu_custom_call.1} parent=1 // pred_fallthru
      _
    // Predicated region
    $region10: #{tpu_custom_call.1} parent=1 // pred_check
      _
    $region11: #{tpu_custom_call.1} parent=1 // pred_check_branch
      %32 = sbr.rel (0) target = $region13
    $region12: #{tpu_custom_call.1} parent=1 // pred_region
      %s34 = ssub.s32 88576, 88576
      %35 = vsyncadd [#allocation6], %s34
      %s36 = sshll.u32 [#allocation7], 4
      %s37 = int_to_ptr.vmem [resolvable:$true] %s36
      %42 = dma.hbm_to_vmem [thread:$0]  %s2, 88576, %s37, [#allocation6], 128, 128, 8
    $region13: #{tpu_custom_call.1} parent=1 // pred_fallthru
      _
    // Predicated region
    $region14: #{tpu_custom_call.1} parent=1 // pred_check
      _
    $region15: #{tpu_custom_call.1} parent=1 // pred_check_branch
      %44 = sbr.rel (0) target = $region17
    $region16: #{tpu_custom_call.1} parent=1 // pred_region
      %45 = dma.done [#allocation3], 1024
    $region17: #{tpu_custom_call.1} parent=1 // pred_fallthru
      _
    // Predicated region
    $region18: #{tpu_custom_call.1} parent=1 // pred_check
      _
    $region19: #{tpu_custom_call.1} parent=1 // pred_check_branch
      %47 = sbr.rel (0) target = $region21
    $region20: #{tpu_custom_call.1} parent=1 // pred_region
      %48 = dma.done [#allocation6], 4096
    $region21: #{tpu_custom_call.1} parent=1 // pred_fallthru
      _
    // Predicated region
    $region22: #{tpu_custom_call.1} parent=1 // pred_check
      _
    $region23: #{tpu_custom_call.1} parent=1 // pred_check_branch
      %50 = sbr.rel (0) target = $region25
    $region24: #{tpu_custom_call.1} parent=1 // pred_region
      %51 = dma.done [#allocation6], 88576
    $region25: #{tpu_custom_call.1} parent=1 // pred_fallthru
      _
    %v52 = vld [vmem:[#allocation2] sm:$0xff]
    %v53 = vld [vmem:[#allocation2 + $0x8] sm:$0xff]
    %v54 = vld [vmem:[#allocation2 + $0x10] sm:$0xff]
    %v55 = vld [vmem:[#allocation2 + $0x18] sm:$0xff]
    %v56 = vld [vmem:[#allocation2 + $0x20] sm:$0xff]
    %v57 = vld [vmem:[#allocation2 + $0x28] sm:$0xff]
    %v58 = vld [vmem:[#allocation2 + $0x30] sm:$0xff]
    %v59 = vld [vmem:[#allocation2 + $0x38] sm:$0xff]
    %v60 = vld [vmem:[#allocation5] sm:$0xff]
    %v61 = vld [vmem:[#allocation5 + $0x8] sm:$0xff]
    %v62 = vld [vmem:[#allocation5 + $0x10] sm:$0xff]
    %v63 = vld [vmem:[#allocation5 + $0x18] sm:$0xff]
    %v64 = vld [vmem:[#allocation5 + $0x20] sm:$0xff]
    %v65 = vld [vmem:[#allocation5 + $0x28] sm:$0xff]
    %v66 = vld [vmem:[#allocation5 + $0x30] sm:$0xff]
    %v67 = vld [vmem:[#allocation5 + $0x38] sm:$0xff]
    %v68 = vld [vmem:[#allocation5 + $0x40] sm:$0xff]
    %v69 = vld [vmem:[#allocation5 + $0x48] sm:$0xff]
    %v70 = vld [vmem:[#allocation5 + $0x50] sm:$0xff]
    %v71 = vld [vmem:[#allocation5 + $0x58] sm:$0xff]
    %v72 = vld [vmem:[#allocation5 + $0x60] sm:$0xff]
    %v73 = vld [vmem:[#allocation5 + $0x68] sm:$0xff]
    %v74 = vld [vmem:[#allocation5 + $0x70] sm:$0xff]
    %v75 = vld [vmem:[#allocation5 + $0x78] sm:$0xff]
    %v76 = vld [vmem:[#allocation5 + $0x80] sm:$0xff]
    %v77 = vld [vmem:[#allocation5 + $0x88] sm:$0xff]
    %v78 = vld [vmem:[#allocation5 + $0x90] sm:$0xff]
    %v79 = vld [vmem:[#allocation5 + $0x98] sm:$0xff]
    %v80 = vld [vmem:[#allocation5 + $0xa0] sm:$0xff]
    %v81 = vld [vmem:[#allocation5 + $0xa8] sm:$0xff]
    %v82 = vld [vmem:[#allocation5 + $0xb0] sm:$0xff]
    %v83 = vld [vmem:[#allocation5 + $0xb8] sm:$0xff]
    %v84 = vld [vmem:[#allocation5 + $0xc0] sm:$0xff]
    %v85 = vld [vmem:[#allocation5 + $0xc8] sm:$0xff]
    %v86 = vld [vmem:[#allocation5 + $0xd0] sm:$0xff]
    %v87 = vld [vmem:[#allocation5 + $0xd8] sm:$0xff]
    %v88 = vld [vmem:[#allocation5 + $0xe0] sm:$0xff]
    %v89 = vld [vmem:[#allocation5 + $0xe8] sm:$0xff]
    %v90 = vld [vmem:[#allocation5 + $0xf0] sm:$0xff]
    %v91 = vld [vmem:[#allocation5 + $0xf8] sm:$0xff]
    %v92 = vld [vmem:[#allocation7] sm:$0xff]
    %v93 = vld [vmem:[#allocation7 + $0x8] sm:$0xff]
    %v94 = vld [vmem:[#allocation7 + $0x10] sm:$0xff]
    %v95 = vld [vmem:[#allocation7 + $0x18] sm:$0xff]
    %v96 = vld [vmem:[#allocation7 + $0x20] sm:$0xff]
    %v97 = vld [vmem:[#allocation7 + $0x28] sm:$0xff]
    %v98 = vld [vmem:[#allocation7 + $0x30] sm:$0xff]
    %v99 = vld [vmem:[#allocation7 + $0x38] sm:$0xff]
    %v100 = vld [vmem:[#allocation7 + $0x40] sm:$0xff]
    %v101 = vld [vmem:[#allocation7 + $0x48] sm:$0xff]
    %v102 = vld [vmem:[#allocation7 + $0x50] sm:$0xff]
    %v103 = vld [vmem:[#allocation7 + $0x58] sm:$0xff]
    %v104 = vld [vmem:[#allocation7 + $0x60] sm:$0xff]
    %v105 = vld [vmem:[#allocation7 + $0x68] sm:$0xff]
    %v106 = vld [vmem:[#allocation7 + $0x70] sm:$0xff]
    %v107 = vld [vmem:[#allocation7 + $0x78] sm:$0xff]
    %v108 = vld [vmem:[#allocation7 + $0x80] sm:$0xff]
    %v109 = vld [vmem:[#allocation7 + $0x88] sm:$0xff]
    %v110 = vld [vmem:[#allocation7 + $0x90] sm:$0xff]
    %v111 = vld [vmem:[#allocation7 + $0x98] sm:$0xff]
    %v112 = vld [vmem:[#allocation7 + $0xa0] sm:$0xff]
    %v113 = vld [vmem:[#allocation7 + $0xa8] sm:$0xff]
    %v114 = vld [vmem:[#allocation7 + $0xb0] sm:$0xff]
    %v115 = vld [vmem:[#allocation7 + $0xb8] sm:$0xff]
    %v116 = vld [vmem:[#allocation7 + $0xc0] sm:$0xff]
    %v117 = vld [vmem:[#allocation7 + $0xc8] sm:$0xff]
    %v118 = vld [vmem:[#allocation7 + $0xd0] sm:$0xff]
    %v119 = vld [vmem:[#allocation7 + $0xd8] sm:$0xff]
    %v120 = vld [vmem:[#allocation7 + $0xe0] sm:$0xff]
    %v121 = vld [vmem:[#allocation7 + $0xe8] sm:$0xff]
    %v122 = vld [vmem:[#allocation7 + $0xf0] sm:$0xff]
    %v123 = vld [vmem:[#allocation7 + $0xf8] sm:$0xff]
    %v124 = vld [vmem:[#allocation7 + $0x100] sm:$0xff]
    %v125 = vld [vmem:[#allocation7 + $0x108] sm:$0xff]
    %v126 = vld [vmem:[#allocation7 + $0x110] sm:$0xff]
    %v127 = vld [vmem:[#allocation7 + $0x118] sm:$0xff]
    %v128 = vld [vmem:[#allocation7 + $0x120] sm:$0xff]
    %v129 = vld [vmem:[#allocation7 + $0x128] sm:$0xff]
    %v130 = vld [vmem:[#allocation7 + $0x130] sm:$0xff]
    %v131 = vld [vmem:[#allocation7 + $0x138] sm:$0xff]
    %v132 = vld [vmem:[#allocation7 + $0x140] sm:$0xff]
    %v133 = vld [vmem:[#allocation7 + $0x148] sm:$0xff]
    %v134 = vld [vmem:[#allocation7 + $0x150] sm:$0xff]
    %v135 = vld [vmem:[#allocation7 + $0x158] sm:$0xff]
    %v136 = vld [vmem:[#allocation7 + $0x160] sm:$0xff]
    %v137 = vld [vmem:[#allocation7 + $0x168] sm:$0xff]
    %v138 = vld [vmem:[#allocation7 + $0x170] sm:$0xff]
    %v139 = vld [vmem:[#allocation7 + $0x178] sm:$0xff]
    %v140 = vld [vmem:[#allocation7 + $0x180] sm:$0xff]
    %v141 = vld [vmem:[#allocation7 + $0x188] sm:$0xff]
    %v142 = vld [vmem:[#allocation7 + $0x190] sm:$0xff]
    %v143 = vld [vmem:[#allocation7 + $0x198] sm:$0xff]
    %v144 = vld [vmem:[#allocation7 + $0x1a0] sm:$0xff]
    %v145 = vld [vmem:[#allocation7 + $0x1a8] sm:$0xff]
    %v146 = vld [vmem:[#allocation7 + $0x1b0] sm:$0xff]
    %v147 = vld [vmem:[#allocation7 + $0x1b8] sm:$0xff]
    %v148 = vld [vmem:[#allocation7 + $0x1c0] sm:$0xff]
    %v149 = vld [vmem:[#allocation7 + $0x1c8] sm:$0xff]
    %v150 = vld [vmem:[#allocation7 + $0x1d0] sm:$0xff]
    %v151 = vld [vmem:[#allocation7 + $0x1d8] sm:$0xff]
    %v152 = vld [vmem:[#allocation7 + $0x1e0] sm:$0xff]
    %v153 = vld [vmem:[#allocation7 + $0x1e8] sm:$0xff]
    %v154 = vld [vmem:[#allocation7 + $0x1f0] sm:$0xff]
    %v155 = vld [vmem:[#allocation7 + $0x1f8] sm:$0xff]
    %v156 = vld [vmem:[#allocation7 + $0x200] sm:$0xff]
    %v157 = vld [vmem:[#allocation7 + $0x208] sm:$0xff]
    %v158 = vld [vmem:[#allocation7 + $0x210] sm:$0xff]
    %v159 = vld [vmem:[#allocation7 + $0x218] sm:$0xff]
    %v160 = vld [vmem:[#allocation7 + $0x220] sm:$0xff]
    %v161 = vld [vmem:[#allocation7 + $0x228] sm:$0xff]
    %v162 = vld [vmem:[#allocation7 + $0x230] sm:$0xff]
    %v163 = vld [vmem:[#allocation7 + $0x238] sm:$0xff]
    %v164 = vld [vmem:[#allocation7 + $0x240] sm:$0xff]
    %v165 = vld [vmem:[#allocation7 + $0x248] sm:$0xff]
    %v166 = vld [vmem:[#allocation7 + $0x250] sm:$0xff]
    %v167 = vld [vmem:[#allocation7 + $0x258] sm:$0xff]
    %v168 = vld [vmem:[#allocation7 + $0x260] sm:$0xff]
    %v169 = vld [vmem:[#allocation7 + $0x268] sm:$0xff]
    %v170 = vld [vmem:[#allocation7 + $0x270] sm:$0xff]
    %v171 = vld [vmem:[#allocation7 + $0x278] sm:$0xff]
    %v172 = vld [vmem:[#allocation7 + $0x280] sm:$0xff]
    %v173 = vld [vmem:[#allocation7 + $0x288] sm:$0xff]
    %v174 = vld [vmem:[#allocation7 + $0x290] sm:$0xff]
    %v175 = vld [vmem:[#allocation7 + $0x298] sm:$0xff]
    %v176 = vld [vmem:[#allocation7 + $0x2a0] sm:$0xff]
    %v177 = vld [vmem:[#allocation7 + $0x2a8] sm:$0xff]
    %v178 = vld [vmem:[#allocation7 + $0x2b0] sm:$0xff]
    %v179 = vld [vmem:[#allocation7 + $0x2b8] sm:$0xff]
    %v180 = vld [vmem:[#allocation7 + $0x2c0] sm:$0xff]
    %v181 = vld [vmem:[#allocation7 + $0x2c8] sm:$0xff]
    %v182 = vld [vmem:[#allocation7 + $0x2d0] sm:$0xff]
    %v183 = vld [vmem:[#allocation7 + $0x2d8] sm:$0xff]
    %v184 = vld [vmem:[#allocation7 + $0x2e0] sm:$0xff]
    %v185 = vld [vmem:[#allocation7 + $0x2e8] sm:$0xff]
    %v186 = vld [vmem:[#allocation7 + $0x2f0] sm:$0xff]
    %v187 = vld [vmem:[#allocation7 + $0x2f8] sm:$0xff]
    %v188 = vld [vmem:[#allocation7 + $0x300] sm:$0xff]
    %v189 = vld [vmem:[#allocation7 + $0x308] sm:$0xff]
    %v190 = vld [vmem:[#allocation7 + $0x310] sm:$0xff]
    %v191 = vld [vmem:[#allocation7 + $0x318] sm:$0xff]
    %v192 = vld [vmem:[#allocation7 + $0x320] sm:$0xff]
    %v193 = vld [vmem:[#allocation7 + $0x328] sm:$0xff]
    %v194 = vld [vmem:[#allocation7 + $0x330] sm:$0xff]
    %v195 = vld [vmem:[#allocation7 + $0x338] sm:$0xff]
    %v196 = vld [vmem:[#allocation7 + $0x340] sm:$0xff]
    %v197 = vld [vmem:[#allocation7 + $0x348] sm:$0xff]
    %v198 = vld [vmem:[#allocation7 + $0x350] sm:$0xff]
    %v199 = vld [vmem:[#allocation7 + $0x358] sm:$0xff]
    %v200 = vld [vmem:[#allocation7 + $0x360] sm:$0xff]
    %v201 = vld [vmem:[#allocation7 + $0x368] sm:$0xff]
    %v202 = vld [vmem:[#allocation7 + $0x370] sm:$0xff]
    %v203 = vld [vmem:[#allocation7 + $0x378] sm:$0xff]
    %v204 = vld [vmem:[#allocation7 + $0x380] sm:$0xff]
    %v205 = vld [vmem:[#allocation7 + $0x388] sm:$0xff]
    %v206 = vld [vmem:[#allocation7 + $0x390] sm:$0xff]
    %v207 = vld [vmem:[#allocation7 + $0x398] sm:$0xff]
    %v208 = vld [vmem:[#allocation7 + $0x3a0] sm:$0xff]
    %v209 = vld [vmem:[#allocation7 + $0x3a8] sm:$0xff]
    %v210 = vld [vmem:[#allocation7 + $0x3b0] sm:$0xff]
    %v211 = vld [vmem:[#allocation7 + $0x3b8] sm:$0xff]
    %v212 = vld [vmem:[#allocation7 + $0x3c0] sm:$0xff]
    %v213 = vld [vmem:[#allocation7 + $0x3c8] sm:$0xff]
    %v214 = vld [vmem:[#allocation7 + $0x3d0] sm:$0xff]
    %v215 = vld [vmem:[#allocation7 + $0x3d8] sm:$0xff]
    %v216 = vld [vmem:[#allocation7 + $0x3e0] sm:$0xff]
    %v217 = vld [vmem:[#allocation7 + $0x3e8] sm:$0xff]
    %v218 = vld [vmem:[#allocation7 + $0x3f0] sm:$0xff]
    %v219 = vld [vmem:[#allocation7 + $0x3f8] sm:$0xff]
    %v220 = vld [vmem:[#allocation7 + $0x1400] sm:$0x1]
    %v221 = vlaneseq
    %v222 = vshrl.u32 %v221, 7
    %v223 = vsub.s32 0, %v222
    %v224 = vrot.slane %v220, %v223
    %225 = vmatprep.subr.mxu0 0.0
    %226 = vmatpush1.msra.mxu0 %v92
    %227 = vmatprep.subr.mxu0 0.0
    %228 = vmatpush1.msra.mxu0 %v93
    %229 = vmatprep.subr.mxu0 0.0
    %230 = vmatpush1.msra.mxu0 %v94
    %231 = vmatprep.subr.mxu0 0.0
    %232 = vmatpush1.msra.mxu0 %v95
    %233 = vmatprep.subr.mxu0 0.0
    %234 = vmatpush1.msra.mxu0 %v96
    %235 = vmatprep.subr.mxu0 0.0
    %236 = vmatpush1.msra.mxu0 %v97
    %237 = vmatprep.subr.mxu0 0.0
    %238 = vmatpush1.msra.mxu0 %v98
    %239 = vmatprep.subr.mxu0 0.0
    %240 = vmatpush1.msra.mxu0 %v99
    %241 = vmatprep.subr.mxu0 0.0
    %242 = vmatpush1.msra.mxu0 %v100
    %243 = vmatprep.subr.mxu0 0.0
    %244 = vmatpush1.msra.mxu0 %v101
    %245 = vmatprep.subr.mxu0 0.0
    %246 = vmatpush1.msra.mxu0 %v102
    %247 = vmatprep.subr.mxu0 0.0
    %248 = vmatpush1.msra.mxu0 %v103
    %249 = vmatprep.subr.mxu0 0.0
    %250 = vmatpush1.msra.mxu0 %v104
    %251 = vmatprep.subr.mxu0 0.0
    %252 = vmatpush1.msra.mxu0 %v105
    %253 = vmatprep.subr.mxu0 0.0
    %254 = vmatpush1.msra.mxu0 %v106
    %255 = vmatprep.subr.mxu0 0.0
    %256 = vmatpush1.msra.mxu0 %v107
    %257 = vmatprep.subr.mxu0 0.0
    %258 = vmatpush1.msra.mxu0 %v108
    %259 = vmatprep.subr.mxu0 0.0
    %260 = vmatpush1.msra.mxu0 %v109
    %261 = vmatprep.subr.mxu0 0.0
    %262 = vmatpush1.msra.mxu0 %v110
    %263 = vmatprep.subr.mxu0 0.0
    %264 = vmatpush1.msra.mxu0 %v111
    %265 = vmatprep.subr.mxu0 0.0
    %266 = vmatpush1.msra.mxu0 %v112
    %267 = vmatprep.subr.mxu0 0.0
    %268 = vmatpush1.msra.mxu0 %v113
    %269 = vmatprep.subr.mxu0 0.0
    %270 = vmatpush1.msra.mxu0 %v114
    %271 = vmatprep.subr.mxu0 0.0
    %272 = vmatpush1.msra.mxu0 %v115
    %273 = vmatprep.subr.mxu0 0.0
    %274 = vmatpush1.msra.mxu0 %v116
    %275 = vmatprep.subr.mxu0 0.0
    %276 = vmatpush1.msra.mxu0 %v117
    %277 = vmatprep.subr.mxu0 0.0
    %278 = vmatpush1.msra.mxu0 %v118
    %279 = vmatprep.subr.mxu0 0.0
    %280 = vmatpush1.msra.mxu0 %v119
    %281 = vmatprep.subr.mxu0 0.0
    %282 = vmatpush1.msra.mxu0 %v120
    %283 = vmatprep.subr.mxu0 0.0
    %284 = vmatpush1.msra.mxu0 %v121
    %285 = vmatprep.subr.mxu0 0.0
    %286 = vmatpush1.msra.mxu0 %v122
    %287 = vmatprep.subr.mxu0 0.0
    %288 = vmatpush1.msra.mxu0 %v123
    %289 = vmatprep.mubr.f32.mxu0 %v53
    %290 = vmatmul.mubr.f32.gmra.mrb[0].mxu0 %v52
    %v291 = vpop.f32.mrb[0].mxu0
    %v292 = vadd.f32 %v224, %v291
    %v293 = vpop.f32.mrb[0].mxu0
    %294 = vdwg.mxu0
    %295 = vmatprep.subr.mxu0 0.0
    %296 = vmatpush1.msra.mxu0 %v124
    %297 = vmatprep.subr.mxu0 0.0
    %298 = vmatpush1.msra.mxu0 %v125
    %299 = vmatprep.subr.mxu0 0.0
    %300 = vmatpush1.msra.mxu0 %v126
    %301 = vmatprep.subr.mxu0 0.0
    %302 = vmatpush1.msra.mxu0 %v127
    %303 = vmatprep.subr.mxu0 0.0
    %304 = vmatpush1.msra.mxu0 %v128
    %305 = vmatprep.subr.mxu0 0.0
    %306 = vmatpush1.msra.mxu0 %v129
    %307 = vmatprep.subr.mxu0 0.0
    %308 = vmatpush1.msra.mxu0 %v130
    %309 = vmatprep.subr.mxu0 0.0
    %310 = vmatpush1.msra.mxu0 %v131
    %311 = vmatprep.subr.mxu0 0.0
    %312 = vmatpush1.msra.mxu0 %v132
    %313 = vmatprep.subr.mxu0 0.0
    %314 = vmatpush1.msra.mxu0 %v133
    %315 = vmatprep.subr.mxu0 0.0
    %316 = vmatpush1.msra.mxu0 %v134
    %317 = vmatprep.subr.mxu0 0.0
    %318 = vmatpush1.msra.mxu0 %v135
    %319 = vmatprep.subr.mxu0 0.0
    %320 = vmatpush1.msra.mxu0 %v136
    %321 = vmatprep.subr.mxu0 0.0
    %322 = vmatpush1.msra.mxu0 %v137
    %323 = vmatprep.subr.mxu0 0.0
    %324 = vmatpush1.msra.mxu0 %v138
    %325 = vmatprep.subr.mxu0 0.0
    %326 = vmatpush1.msra.mxu0 %v139
    %327 = vmatprep.subr.mxu0 0.0
    %328 = vmatpush1.msra.mxu0 %v140
    %329 = vmatprep.subr.mxu0 0.0
    %330 = vmatpush1.msra.mxu0 %v141
    %331 = vmatprep.subr.mxu0 0.0
    %332 = vmatpush1.msra.mxu0 %v142
    %333 = vmatprep.subr.mxu0 0.0
    %334 = vmatpush1.msra.mxu0 %v143
    %335 = vmatprep.subr.mxu0 0.0
    %336 = vmatpush1.msra.mxu0 %v144
    %337 = vmatprep.subr.mxu0 0.0
    %338 = vmatpush1.msra.mxu0 %v145
    %339 = vmatprep.subr.mxu0 0.0
    %340 = vmatpush1.msra.mxu0 %v146
    %341 = vmatprep.subr.mxu0 0.0
    %342 = vmatpush1.msra.mxu0 %v147
    %343 = vmatprep.subr.mxu0 0.0
    %344 = vmatpush1.msra.mxu0 %v148
    %345 = vmatprep.subr.mxu0 0.0
    %346 = vmatpush1.msra.mxu0 %v149
    %347 = vmatprep.subr.mxu0 0.0
    %348 = vmatpush1.msra.mxu0 %v150
    %349 = vmatprep.subr.mxu0 0.0
    %350 = vmatpush1.msra.mxu0 %v151
    %351 = vmatprep.subr.mxu0 0.0
    %352 = vmatpush1.msra.mxu0 %v152
    %353 = vmatprep.subr.mxu0 0.0
    %354 = vmatpush1.msra.mxu0 %v153
    %355 = vmatprep.subr.mxu0 0.0
    %356 = vmatpush1.msra.mxu0 %v154
    %357 = vmatprep.subr.mxu0 0.0
    %358 = vmatpush1.msra.mxu0 %v155
    %359 = vmatprep.mubr.f32.mxu0 %v55
    %360 = vmatmul.mubr.f32.gmra.mrb[0].mxu0 %v54
    %v361 = vpop.f32.mrb[0].mxu0
    %v362 = vadd.f32 %v292, %v361
    %v363 = vpop.f32.mrb[0].mxu0
    %364 = vdwg.mxu0
    %365 = vmatprep.subr.mxu0 0.0
    %366 = vmatpush1.msra.mxu0 %v156
    %367 = vmatprep.subr.mxu0 0.0
    %368 = vmatpush1.msra.mxu0 %v157
    %369 = vmatprep.subr.mxu0 0.0
    %370 = vmatpush1.msra.mxu0 %v158
    %371 = vmatprep.subr.mxu0 0.0
    %372 = vmatpush1.msra.mxu0 %v159
    %373 = vmatprep.subr.mxu0 0.0
    %374 = vmatpush1.msra.mxu0 %v160
    %375 = vmatprep.subr.mxu0 0.0
    %376 = vmatpush1.msra.mxu0 %v161
    %377 = vmatprep.subr.mxu0 0.0
    %378 = vmatpush1.msra.mxu0 %v162
    %379 = vmatprep.subr.mxu0 0.0
    %380 = vmatpush1.msra.mxu0 %v163
    %381 = vmatprep.subr.mxu0 0.0
    %382 = vmatpush1.msra.mxu0 %v164
    %383 = vmatprep.subr.mxu0 0.0
    %384 = vmatpush1.msra.mxu0 %v165
    %385 = vmatprep.subr.mxu0 0.0
    %386 = vmatpush1.msra.mxu0 %v166
    %387 = vmatprep.subr.mxu0 0.0
    %388 = vmatpush1.msra.mxu0 %v167
    %389 = vmatprep.subr.mxu0 0.0
    %390 = vmatpush1.msra.mxu0 %v168
    %391 = vmatprep.subr.mxu0 0.0
    %392 = vmatpush1.msra.mxu0 %v169
    %393 = vmatprep.subr.mxu0 0.0
    %394 = vmatpush1.msra.mxu0 %v170
    %395 = vmatprep.subr.mxu0 0.0
    %396 = vmatpush1.msra.mxu0 %v171
    %397 = vmatprep.subr.mxu0 0.0
    %398 = vmatpush1.msra.mxu0 %v172
    %399 = vmatprep.subr.mxu0 0.0
    %400 = vmatpush1.msra.mxu0 %v173
    %401 = vmatprep.subr.mxu0 0.0
    %402 = vmatpush1.msra.mxu0 %v174
    %403 = vmatprep.subr.mxu0 0.0
    %404 = vmatpush1.msra.mxu0 %v175
    %405 = vmatprep.subr.mxu0 0.0
    %406 = vmatpush1.msra.mxu0 %v176
    %407 = vmatprep.subr.mxu0 0.0
    %408 = vmatpush1.msra.mxu0 %v177
    %409 = vmatprep.subr.mxu0 0.0
    %410 = vmatpush1.msra.mxu0 %v178
    %411 = vmatprep.subr.mxu0 0.0
    %412 = vmatpush1.msra.mxu0 %v179
    %413 = vmatprep.subr.mxu0 0.0
    %414 = vmatpush1.msra.mxu0 %v180
    %415 = vmatprep.subr.mxu0 0.0
    %416 = vmatpush1.msra.mxu0 %v181
    %417 = vmatprep.subr.mxu0 0.0
    %418 = vmatpush1.msra.mxu0 %v182
    %419 = vmatprep.subr.mxu0 0.0
    %420 = vmatpush1.msra.mxu0 %v183
    %421 = vmatprep.subr.mxu0 0.0
    %422 = vmatpush1.msra.mxu0 %v184
    %423 = vmatprep.subr.mxu0 0.0
    %424 = vmatpush1.msra.mxu0 %v185
    %425 = vmatprep.subr.mxu0 0.0
    %426 = vmatpush1.msra.mxu0 %v186
    %427 = vmatprep.subr.mxu0 0.0
    %428 = vmatpush1.msra.mxu0 %v187
    %429 = vmatprep.mubr.f32.mxu0 %v57
    %430 = vmatmul.mubr.f32.gmra.mrb[0].mxu0 %v56
    %v431 = vpop.f32.mrb[0].mxu0
    %v432 = vadd.f32 %v362, %v431
    %v433 = vpop.f32.mrb[0].mxu0
    %434 = vdwg.mxu0
    %435 = vmatprep.subr.mxu0 0.0
    %436 = vmatpush1.msra.mxu0 %v188
    %437 = vmatprep.subr.mxu0 0.0
    %438 = vmatpush1.msra.mxu0 %v189
    %439 = vmatprep.subr.mxu0 0.0
    %440 = vmatpush1.msra.mxu0 %v190
    %441 = vmatprep.subr.mxu0 0.0
    %442 = vmatpush1.msra.mxu0 %v191
    %443 = vmatprep.subr.mxu0 0.0
    %444 = vmatpush1.msra.mxu0 %v192
    %445 = vmatprep.subr.mxu0 0.0
    %446 = vmatpush1.msra.mxu0 %v193
    %447 = vmatprep.subr.mxu0 0.0
    %448 = vmatpush1.msra.mxu0 %v194
    %449 = vmatprep.subr.mxu0 0.0
    %450 = vmatpush1.msra.mxu0 %v195
    %451 = vmatprep.subr.mxu0 0.0
    %452 = vmatpush1.msra.mxu0 %v196
    %453 = vmatprep.subr.mxu0 0.0
    %454 = vmatpush1.msra.mxu0 %v197
    %455 = vmatprep.subr.mxu0 0.0
    %456 = vmatpush1.msra.mxu0 %v198
    %457 = vmatprep.subr.mxu0 0.0
    %458 = vmatpush1.msra.mxu0 %v199
    %459 = vmatprep.subr.mxu0 0.0
    %460 = vmatpush1.msra.mxu0 %v200
    %461 = vmatprep.subr.mxu0 0.0
    %462 = vmatpush1.msra.mxu0 %v201
    %463 = vmatprep.subr.mxu0 0.0
    %464 = vmatpush1.msra.mxu0 %v202
    %465 = vmatprep.subr.mxu0 0.0
    %466 = vmatpush1.msra.mxu0 %v203
    %467 = vmatprep.subr.mxu0 0.0
    %468 = vmatpush1.msra.mxu0 %v204
    %469 = vmatprep.subr.mxu0 0.0
    %470 = vmatpush1.msra.mxu0 %v205
    %471 = vmatprep.subr.mxu0 0.0
    %472 = vmatpush1.msra.mxu0 %v206
    %473 = vmatprep.subr.mxu0 0.0
    %474 = vmatpush1.msra.mxu0 %v207
    %475 = vmatprep.subr.mxu0 0.0
    %476 = vmatpush1.msra.mxu0 %v208
    %477 = vmatprep.subr.mxu0 0.0
    %478 = vmatpush1.msra.mxu0 %v209
    %479 = vmatprep.subr.mxu0 0.0
    %480 = vmatpush1.msra.mxu0 %v210
    %481 = vmatprep.subr.mxu0 0.0
    %482 = vmatpush1.msra.mxu0 %v211
    %483 = vmatprep.subr.mxu0 0.0
    %484 = vmatpush1.msra.mxu0 %v212
    %485 = vmatprep.subr.mxu0 0.0
    %486 = vmatpush1.msra.mxu0 %v213
    %487 = vmatprep.subr.mxu0 0.0
    %488 = vmatpush1.msra.mxu0 %v214
    %489 = vmatprep.subr.mxu0 0.0
    %490 = vmatpush1.msra.mxu0 %v215
    %491 = vmatprep.subr.mxu0 0.0
    %492 = vmatpush1.msra.mxu0 %v216
    %493 = vmatprep.subr.mxu0 0.0
    %494 = vmatpush1.msra.mxu0 %v217
    %495 = vmatprep.subr.mxu0 0.0
    %496 = vmatpush1.msra.mxu0 %v218
    %497 = vmatprep.subr.mxu0 0.0
    %498 = vmatpush1.msra.mxu0 %v219
    %499 = vmatprep.mubr.f32.mxu0 %v59
    %500 = vmatmul.mubr.f32.gmra.mrb[0].mxu0 %v58
    %v501 = vpop.f32.mrb[0].mxu0
    %v502 = vadd.f32 %v432, %v501
    %v503 = vpop.f32.mrb[0].mxu0
    %504 = vdwg.mxu0
    %v505 = vmax.f32 %v502, 0.0
    %v506 = vld [vmem:[#allocation7 + $0x400] sm:$0xff]
    %v507 = vld [vmem:[#allocation7 + $0x408] sm:$0xff]
    %v508 = vld [vmem:[#allocation7 + $0x410] sm:$0xff]
    %v509 = vld [vmem:[#allocation7 + $0x418] sm:$0xff]
    %v510 = vld [vmem:[#allocation7 + $0x420] sm:$0xff]
    %v511 = vld [vmem:[#allocation7 + $0x428] sm:$0xff]
    %v512 = vld [vmem:[#allocation7 + $0x430] sm:$0xff]
    %v513 = vld [vmem:[#allocation7 + $0x438] sm:$0xff]
    %v514 = vld [vmem:[#allocation7 + $0x440] sm:$0xff]
    %v515 = vld [vmem:[#allocation7 + $0x448] sm:$0xff]
    %v516 = vld [vmem:[#allocation7 + $0x450] sm:$0xff]
    %v517 = vld [vmem:[#allocation7 + $0x458] sm:$0xff]
    %v518 = vld [vmem:[#allocation7 + $0x460] sm:$0xff]
    %v519 = vld [vmem:[#allocation7 + $0x468] sm:$0xff]
    %v520 = vld [vmem:[#allocation7 + $0x470] sm:$0xff]
    %v521 = vld [vmem:[#allocation7 + $0x478] sm:$0xff]
    %v522 = vld [vmem:[#allocation7 + $0x480] sm:$0xff]
    %v523 = vld [vmem:[#allocation7 + $0x488] sm:$0xff]
    %v524 = vld [vmem:[#allocation7 + $0x490] sm:$0xff]
    %v525 = vld [vmem:[#allocation7 + $0x498] sm:$0xff]
    %v526 = vld [vmem:[#allocation7 + $0x4a0] sm:$0xff]
    %v527 = vld [vmem:[#allocation7 + $0x4a8] sm:$0xff]
    %v528 = vld [vmem:[#allocation7 + $0x4b0] sm:$0xff]
    %v529 = vld [vmem:[#allocation7 + $0x4b8] sm:$0xff]
    %v530 = vld [vmem:[#allocation7 + $0x4c0] sm:$0xff]
    %v531 = vld [vmem:[#allocation7 + $0x4c8] sm:$0xff]
    %v532 = vld [vmem:[#allocation7 + $0x4d0] sm:$0xff]
    %v533 = vld [vmem:[#allocation7 + $0x4d8] sm:$0xff]
    %v534 = vld [vmem:[#allocation7 + $0x4e0] sm:$0xff]
    %v535 = vld [vmem:[#allocation7 + $0x4e8] sm:$0xff]
    %v536 = vld [vmem:[#allocation7 + $0x4f0] sm:$0xff]
    %v537 = vld [vmem:[#allocation7 + $0x4f8] sm:$0xff]
    %v538 = vld [vmem:[#allocation7 + $0x500] sm:$0xff]
    %v539 = vld [vmem:[#allocation7 + $0x508] sm:$0xff]
    %v540 = vld [vmem:[#allocation7 + $0x510] sm:$0xff]
    %v541 = vld [vmem:[#allocation7 + $0x518] sm:$0xff]
    %v542 = vld [vmem:[#allocation7 + $0x520] sm:$0xff]
    %v543 = vld [vmem:[#allocation7 + $0x528] sm:$0xff]
    %v544 = vld [vmem:[#allocation7 + $0x530] sm:$0xff]
    %v545 = vld [vmem:[#allocation7 + $0x538] sm:$0xff]
    %v546 = vld [vmem:[#allocation7 + $0x540] sm:$0xff]
    %v547 = vld [vmem:[#allocation7 + $0x548] sm:$0xff]
    %v548 = vld [vmem:[#allocation7 + $0x550] sm:$0xff]
    %v549 = vld [vmem:[#allocation7 + $0x558] sm:$0xff]
    %v550 = vld [vmem:[#allocation7 + $0x560] sm:$0xff]
    %v551 = vld [vmem:[#allocation7 + $0x568] sm:$0xff]
    %v552 = vld [vmem:[#allocation7 + $0x570] sm:$0xff]
    %v553 = vld [vmem:[#allocation7 + $0x578] sm:$0xff]
    %v554 = vld [vmem:[#allocation7 + $0x580] sm:$0xff]
    %v555 = vld [vmem:[#allocation7 + $0x588] sm:$0xff]
    %v556 = vld [vmem:[#allocation7 + $0x590] sm:$0xff]
    %v557 = vld [vmem:[#allocation7 + $0x598] sm:$0xff]
    %v558 = vld [vmem:[#allocation7 + $0x5a0] sm:$0xff]
    %v559 = vld [vmem:[#allocation7 + $0x5a8] sm:$0xff]
    %v560 = vld [vmem:[#allocation7 + $0x5b0] sm:$0xff]
    %v561 = vld [vmem:[#allocation7 + $0x5b8] sm:$0xff]
    %v562 = vld [vmem:[#allocation7 + $0x5c0] sm:$0xff]
    %v563 = vld [vmem:[#allocation7 + $0x5c8] sm:$0xff]
    %v564 = vld [vmem:[#allocation7 + $0x5d0] sm:$0xff]
    %v565 = vld [vmem:[#allocation7 + $0x5d8] sm:$0xff]
    %v566 = vld [vmem:[#allocation7 + $0x5e0] sm:$0xff]
    %v567 = vld [vmem:[#allocation7 + $0x5e8] sm:$0xff]
    %v568 = vld [vmem:[#allocation7 + $0x5f0] sm:$0xff]
    %v569 = vld [vmem:[#allocation7 + $0x5f8] sm:$0xff]
    %v570 = vld [vmem:[#allocation7 + $0x600] sm:$0xff]
    %v571 = vld [vmem:[#allocation7 + $0x608] sm:$0xff]
    %v572 = vld [vmem:[#allocation7 + $0x610] sm:$0xff]
    %v573 = vld [vmem:[#allocation7 + $0x618] sm:$0xff]
    %v574 = vld [vmem:[#allocation7 + $0x620] sm:$0xff]
    %v575 = vld [vmem:[#allocation7 + $0x628] sm:$0xff]
    %v576 = vld [vmem:[#allocation7 + $0x630] sm:$0xff]
    %v577 = vld [vmem:[#allocation7 + $0x638] sm:$0xff]
    %v578 = vld [vmem:[#allocation7 + $0x640] sm:$0xff]
    %v579 = vld [vmem:[#allocation7 + $0x648] sm:$0xff]
    %v580 = vld [vmem:[#allocation7 + $0x650] sm:$0xff]
    %v581 = vld [vmem:[#allocation7 + $0x658] sm:$0xff]
    %v582 = vld [vmem:[#allocation7 + $0x660] sm:$0xff]
    %v583 = vld [vmem:[#allocation7 + $0x668] sm:$0xff]
    %v584 = vld [vmem:[#allocation7 + $0x670] sm:$0xff]
    %v585 = vld [vmem:[#allocation7 + $0x678] sm:$0xff]
    %v586 = vld [vmem:[#allocation7 + $0x680] sm:$0xff]
    %v587 = vld [vmem:[#allocation7 + $0x688] sm:$0xff]
    %v588 = vld [vmem:[#allocation7 + $0x690] sm:$0xff]
    %v589 = vld [vmem:[#allocation7 + $0x698] sm:$0xff]
    %v590 = vld [vmem:[#allocation7 + $0x6a0] sm:$0xff]
    %v591 = vld [vmem:[#allocation7 + $0x6a8] sm:$0xff]
    %v592 = vld [vmem:[#allocation7 + $0x6b0] sm:$0xff]
    %v593 = vld [vmem:[#allocation7 + $0x6b8] sm:$0xff]
    %v594 = vld [vmem:[#allocation7 + $0x6c0] sm:$0xff]
    %v595 = vld [vmem:[#allocation7 + $0x6c8] sm:$0xff]
    %v596 = vld [vmem:[#allocation7 + $0x6d0] sm:$0xff]
    %v597 = vld [vmem:[#allocation7 + $0x6d8] sm:$0xff]
    %v598 = vld [vmem:[#allocation7 + $0x6e0] sm:$0xff]
    %v599 = vld [vmem:[#allocation7 + $0x6e8] sm:$0xff]
    %v600 = vld [vmem:[#allocation7 + $0x6f0] sm:$0xff]
    %v601 = vld [vmem:[#allocation7 + $0x6f8] sm:$0xff]
    %v602 = vld [vmem:[#allocation7 + $0x700] sm:$0xff]
    %v603 = vld [vmem:[#allocation7 + $0x708] sm:$0xff]
    %v604 = vld [vmem:[#allocation7 + $0x710] sm:$0xff]
    %v605 = vld [vmem:[#allocation7 + $0x718] sm:$0xff]
    %v606 = vld [vmem:[#allocation7 + $0x720] sm:$0xff]
    %v607 = vld [vmem:[#allocation7 + $0x728] sm:$0xff]
    %v608 = vld [vmem:[#allocation7 + $0x730] sm:$0xff]
    %v609 = vld [vmem:[#allocation7 + $0x738] sm:$0xff]
    %v610 = vld [vmem:[#allocation7 + $0x740] sm:$0xff]
    %v611 = vld [vmem:[#allocation7 + $0x748] sm:$0xff]
    %v612 = vld [vmem:[#allocation7 + $0x750] sm:$0xff]
    %v613 = vld [vmem:[#allocation7 + $0x758] sm:$0xff]
    %v614 = vld [vmem:[#allocation7 + $0x760] sm:$0xff]
    %v615 = vld [vmem:[#allocation7 + $0x768] sm:$0xff]
    %v616 = vld [vmem:[#allocation7 + $0x770] sm:$0xff]
    %v617 = vld [vmem:[#allocation7 + $0x778] sm:$0xff]
    %v618 = vld [vmem:[#allocation7 + $0x780] sm:$0xff]
    %v619 = vld [vmem:[#allocation7 + $0x788] sm:$0xff]
    %v620 = vld [vmem:[#allocation7 + $0x790] sm:$0xff]
    %v621 = vld [vmem:[#allocation7 + $0x798] sm:$0xff]
    %v622 = vld [vmem:[#allocation7 + $0x7a0] sm:$0xff]
    %v623 = vld [vmem:[#allocation7 + $0x7a8] sm:$0xff]
    %v624 = vld [vmem:[#allocation7 + $0x7b0] sm:$0xff]
    %v625 = vld [vmem:[#allocation7 + $0x7b8] sm:$0xff]
    %v626 = vld [vmem:[#allocation7 + $0x7c0] sm:$0xff]
    %v627 = vld [vmem:[#allocation7 + $0x7c8] sm:$0xff]
    %v628 = vld [vmem:[#allocation7 + $0x7d0] sm:$0xff]
    %v629 = vld [vmem:[#allocation7 + $0x7d8] sm:$0xff]
    %v630 = vld [vmem:[#allocation7 + $0x7e0] sm:$0xff]
    %v631 = vld [vmem:[#allocation7 + $0x7e8] sm:$0xff]
    %v632 = vld [vmem:[#allocation7 + $0x7f0] sm:$0xff]
    %v633 = vld [vmem:[#allocation7 + $0x7f8] sm:$0xff]
    %v634 = vld [vmem:[#allocation7 + $0x800] sm:$0xff]
    %v635 = vld [vmem:[#allocation7 + $0x808] sm:$0xff]
    %v636 = vld [vmem:[#allocation7 + $0x810] sm:$0xff]
    %v637 = vld [vmem:[#allocation7 + $0x818] sm:$0xff]
    %v638 = vld [vmem:[#allocation7 + $0x820] sm:$0xff]
    %v639 = vld [vmem:[#allocation7 + $0x828] sm:$0xff]
    %v640 = vld [vmem:[#allocation7 + $0x830] sm:$0xff]
    %v641 = vld [vmem:[#allocation7 + $0x838] sm:$0xff]
    %v642 = vld [vmem:[#allocation7 + $0x840] sm:$0xff]
    %v643 = vld [vmem:[#allocation7 + $0x848] sm:$0xff]
    %v644 = vld [vmem:[#allocation7 + $0x850] sm:$0xff]
    %v645 = vld [vmem:[#allocation7 + $0x858] sm:$0xff]
    %v646 = vld [vmem:[#allocation7 + $0x860] sm:$0xff]
    %v647 = vld [vmem:[#allocation7 + $0x868] sm:$0xff]
    %v648 = vld [vmem:[#allocation7 + $0x870] sm:$0xff]
    %v649 = vld [vmem:[#allocation7 + $0x878] sm:$0xff]
    %v650 = vld [vmem:[#allocation7 + $0x880] sm:$0xff]
    %v651 = vld [vmem:[#allocation7 + $0x888] sm:$0xff]
    %v652 = vld [vmem:[#allocation7 + $0x890] sm:$0xff]
    %v653 = vld [vmem:[#allocation7 + $0x898] sm:$0xff]
    %v654 = vld [vmem:[#allocation7 + $0x8a0] sm:$0xff]
    %v655 = vld [vmem:[#allocation7 + $0x8a8] sm:$0xff]
    %v656 = vld [vmem:[#allocation7 + $0x8b0] sm:$0xff]
    %v657 = vld [vmem:[#allocation7 + $0x8b8] sm:$0xff]
    %v658 = vld [vmem:[#allocation7 + $0x8c0] sm:$0xff]
    %v659 = vld [vmem:[#allocation7 + $0x8c8] sm:$0xff]
    %v660 = vld [vmem:[#allocation7 + $0x8d0] sm:$0xff]
    %v661 = vld [vmem:[#allocation7 + $0x8d8] sm:$0xff]
    %v662 = vld [vmem:[#allocation7 + $0x8e0] sm:$0xff]
    %v663 = vld [vmem:[#allocation7 + $0x8e8] sm:$0xff]
    %v664 = vld [vmem:[#allocation7 + $0x8f0] sm:$0xff]
    %v665 = vld [vmem:[#allocation7 + $0x8f8] sm:$0xff]
    %v666 = vld [vmem:[#allocation7 + $0x900] sm:$0xff]
    %v667 = vld [vmem:[#allocation7 + $0x908] sm:$0xff]
    %v668 = vld [vmem:[#allocation7 + $0x910] sm:$0xff]
    %v669 = vld [vmem:[#allocation7 + $0x918] sm:$0xff]
    %v670 = vld [vmem:[#allocation7 + $0x920] sm:$0xff]
    %v671 = vld [vmem:[#allocation7 + $0x928] sm:$0xff]
    %v672 = vld [vmem:[#allocation7 + $0x930] sm:$0xff]
    %v673 = vld [vmem:[#allocation7 + $0x938] sm:$0xff]
    %v674 = vld [vmem:[#allocation7 + $0x940] sm:$0xff]
    %v675 = vld [vmem:[#allocation7 + $0x948] sm:$0xff]
    %v676 = vld [vmem:[#allocation7 + $0x950] sm:$0xff]
    %v677 = vld [vmem:[#allocation7 + $0x958] sm:$0xff]
    %v678 = vld [vmem:[#allocation7 + $0x960] sm:$0xff]
    %v679 = vld [vmem:[#allocation7 + $0x968] sm:$0xff]
    %v680 = vld [vmem:[#allocation7 + $0x970] sm:$0xff]
    %v681 = vld [vmem:[#allocation7 + $0x978] sm:$0xff]
    %v682 = vld [vmem:[#allocation7 + $0x980] sm:$0xff]
    %v683 = vld [vmem:[#allocation7 + $0x988] sm:$0xff]
    %v684 = vld [vmem:[#allocation7 + $0x990] sm:$0xff]
    %v685 = vld [vmem:[#allocation7 + $0x998] sm:$0xff]
    %v686 = vld [vmem:[#allocation7 + $0x9a0] sm:$0xff]
    %v687 = vld [vmem:[#allocation7 + $0x9a8] sm:$0xff]
    %v688 = vld [vmem:[#allocation7 + $0x9b0] sm:$0xff]
    %v689 = vld [vmem:[#allocation7 + $0x9b8] sm:$0xff]
    %v690 = vld [vmem:[#allocation7 + $0x9c0] sm:$0xff]
    %v691 = vld [vmem:[#allocation7 + $0x9c8] sm:$0xff]
    %v692 = vld [vmem:[#allocation7 + $0x9d0] sm:$0xff]
    %v693 = vld [vmem:[#allocation7 + $0x9d8] sm:$0xff]
    %v694 = vld [vmem:[#allocation7 + $0x9e0] sm:$0xff]
    %v695 = vld [vmem:[#allocation7 + $0x9e8] sm:$0xff]
    %v696 = vld [vmem:[#allocation7 + $0x9f0] sm:$0xff]
    %v697 = vld [vmem:[#allocation7 + $0x9f8] sm:$0xff]
    %v698 = vld [vmem:[#allocation7 + $0xa00] sm:$0xff]
    %v699 = vld [vmem:[#allocation7 + $0xa08] sm:$0xff]
    %v700 = vld [vmem:[#allocation7 + $0xa10] sm:$0xff]
    %v701 = vld [vmem:[#allocation7 + $0xa18] sm:$0xff]
    %v702 = vld [vmem:[#allocation7 + $0xa20] sm:$0xff]
    %v703 = vld [vmem:[#allocation7 + $0xa28] sm:$0xff]
    %v704 = vld [vmem:[#allocation7 + $0xa30] sm:$0xff]
    %v705 = vld [vmem:[#allocation7 + $0xa38] sm:$0xff]
    %v706 = vld [vmem:[#allocation7 + $0xa40] sm:$0xff]
    %v707 = vld [vmem:[#allocation7 + $0xa48] sm:$0xff]
    %v708 = vld [vmem:[#allocation7 + $0xa50] sm:$0xff]
    %v709 = vld [vmem:[#allocation7 + $0xa58] sm:$0xff]
    %v710 = vld [vmem:[#allocation7 + $0xa60] sm:$0xff]
    %v711 = vld [vmem:[#allocation7 + $0xa68] sm:$0xff]
    %v712 = vld [vmem:[#allocation7 + $0xa70] sm:$0xff]
    %v713 = vld [vmem:[#allocation7 + $0xa78] sm:$0xff]
    %v714 = vld [vmem:[#allocation7 + $0xa80] sm:$0xff]
    %v715 = vld [vmem:[#allocation7 + $0xa88] sm:$0xff]
    %v716 = vld [vmem:[#allocation7 + $0xa90] sm:$0xff]
    %v717 = vld [vmem:[#allocation7 + $0xa98] sm:$0xff]
    %v718 = vld [vmem:[#allocation7 + $0xaa0] sm:$0xff]
    %v719 = vld [vmem:[#allocation7 + $0xaa8] sm:$0xff]
    %v720 = vld [vmem:[#allocation7 + $0xab0] sm:$0xff]
    %v721 = vld [vmem:[#allocation7 + $0xab8] sm:$0xff]
    %v722 = vld [vmem:[#allocation7 + $0xac0] sm:$0xff]
    %v723 = vld [vmem:[#allocation7 + $0xac8] sm:$0xff]
    %v724 = vld [vmem:[#allocation7 + $0xad0] sm:$0xff]
    %v725 = vld [vmem:[#allocation7 + $0xad8] sm:$0xff]
    %v726 = vld [vmem:[#allocation7 + $0xae0] sm:$0xff]
    %v727 = vld [vmem:[#allocation7 + $0xae8] sm:$0xff]
    %v728 = vld [vmem:[#allocation7 + $0xaf0] sm:$0xff]
    %v729 = vld [vmem:[#allocation7 + $0xaf8] sm:$0xff]
    %v730 = vld [vmem:[#allocation7 + $0xb00] sm:$0xff]
    %v731 = vld [vmem:[#allocation7 + $0xb08] sm:$0xff]
    %v732 = vld [vmem:[#allocation7 + $0xb10] sm:$0xff]
    %v733 = vld [vmem:[#allocation7 + $0xb18] sm:$0xff]
    %v734 = vld [vmem:[#allocation7 + $0xb20] sm:$0xff]
    %v735 = vld [vmem:[#allocation7 + $0xb28] sm:$0xff]
    %v736 = vld [vmem:[#allocation7 + $0xb30] sm:$0xff]
    %v737 = vld [vmem:[#allocation7 + $0xb38] sm:$0xff]
    %v738 = vld [vmem:[#allocation7 + $0xb40] sm:$0xff]
    %v739 = vld [vmem:[#allocation7 + $0xb48] sm:$0xff]
    %v740 = vld [vmem:[#allocation7 + $0xb50] sm:$0xff]
    %v741 = vld [vmem:[#allocation7 + $0xb58] sm:$0xff]
    %v742 = vld [vmem:[#allocation7 + $0xb60] sm:$0xff]
    %v743 = vld [vmem:[#allocation7 + $0xb68] sm:$0xff]
    %v744 = vld [vmem:[#allocation7 + $0xb70] sm:$0xff]
    %v745 = vld [vmem:[#allocation7 + $0xb78] sm:$0xff]
    %v746 = vld [vmem:[#allocation7 + $0xb80] sm:$0xff]
    %v747 = vld [vmem:[#allocation7 + $0xb88] sm:$0xff]
    %v748 = vld [vmem:[#allocation7 + $0xb90] sm:$0xff]
    %v749 = vld [vmem:[#allocation7 + $0xb98] sm:$0xff]
    %v750 = vld [vmem:[#allocation7 + $0xba0] sm:$0xff]
    %v751 = vld [vmem:[#allocation7 + $0xba8] sm:$0xff]
    %v752 = vld [vmem:[#allocation7 + $0xbb0] sm:$0xff]
    %v753 = vld [vmem:[#allocation7 + $0xbb8] sm:$0xff]
    %v754 = vld [vmem:[#allocation7 + $0xbc0] sm:$0xff]
    %v755 = vld [vmem:[#allocation7 + $0xbc8] sm:$0xff]
    %v756 = vld [vmem:[#allocation7 + $0xbd0] sm:$0xff]
    %v757 = vld [vmem:[#allocation7 + $0xbd8] sm:$0xff]
    %v758 = vld [vmem:[#allocation7 + $0xbe0] sm:$0xff]
    %v759 = vld [vmem:[#allocation7 + $0xbe8] sm:$0xff]
    %v760 = vld [vmem:[#allocation7 + $0xbf0] sm:$0xff]
    %v761 = vld [vmem:[#allocation7 + $0xbf8] sm:$0xff]
    %v762 = vld [vmem:[#allocation7 + $0xc00] sm:$0xff]
    %v763 = vld [vmem:[#allocation7 + $0xc08] sm:$0xff]
    %v764 = vld [vmem:[#allocation7 + $0xc10] sm:$0xff]
    %v765 = vld [vmem:[#allocation7 + $0xc18] sm:$0xff]
    %v766 = vld [vmem:[#allocation7 + $0xc20] sm:$0xff]
    %v767 = vld [vmem:[#allocation7 + $0xc28] sm:$0xff]
    %v768 = vld [vmem:[#allocation7 + $0xc30] sm:$0xff]
    %v769 = vld [vmem:[#allocation7 + $0xc38] sm:$0xff]
    %v770 = vld [vmem:[#allocation7 + $0xc40] sm:$0xff]
    %v771 = vld [vmem:[#allocation7 + $0xc48] sm:$0xff]
    %v772 = vld [vmem:[#allocation7 + $0xc50] sm:$0xff]
    %v773 = vld [vmem:[#allocation7 + $0xc58] sm:$0xff]
    %v774 = vld [vmem:[#allocation7 + $0xc60] sm:$0xff]
    %v775 = vld [vmem:[#allocation7 + $0xc68] sm:$0xff]
    %v776 = vld [vmem:[#allocation7 + $0xc70] sm:$0xff]
    %v777 = vld [vmem:[#allocation7 + $0xc78] sm:$0xff]
    %v778 = vld [vmem:[#allocation7 + $0xc80] sm:$0xff]
    %v779 = vld [vmem:[#allocation7 + $0xc88] sm:$0xff]
    %v780 = vld [vmem:[#allocation7 + $0xc90] sm:$0xff]
    %v781 = vld [vmem:[#allocation7 + $0xc98] sm:$0xff]
    %v782 = vld [vmem:[#allocation7 + $0xca0] sm:$0xff]
    %v783 = vld [vmem:[#allocation7 + $0xca8] sm:$0xff]
    %v784 = vld [vmem:[#allocation7 + $0xcb0] sm:$0xff]
    %v785 = vld [vmem:[#allocation7 + $0xcb8] sm:$0xff]
    %v786 = vld [vmem:[#allocation7 + $0xcc0] sm:$0xff]
    %v787 = vld [vmem:[#allocation7 + $0xcc8] sm:$0xff]
    %v788 = vld [vmem:[#allocation7 + $0xcd0] sm:$0xff]
    %v789 = vld [vmem:[#allocation7 + $0xcd8] sm:$0xff]
    %v790 = vld [vmem:[#allocation7 + $0xce0] sm:$0xff]
    %v791 = vld [vmem:[#allocation7 + $0xce8] sm:$0xff]
    %v792 = vld [vmem:[#allocation7 + $0xcf0] sm:$0xff]
    %v793 = vld [vmem:[#allocation7 + $0xcf8] sm:$0xff]
    %v794 = vld [vmem:[#allocation7 + $0xd00] sm:$0xff]
    %v795 = vld [vmem:[#allocation7 + $0xd08] sm:$0xff]
    %v796 = vld [vmem:[#allocation7 + $0xd10] sm:$0xff]
    %v797 = vld [vmem:[#allocation7 + $0xd18] sm:$0xff]
    %v798 = vld [vmem:[#allocation7 + $0xd20] sm:$0xff]
    %v799 = vld [vmem:[#allocation7 + $0xd28] sm:$0xff]
    %v800 = vld [vmem:[#allocation7 + $0xd30] sm:$0xff]
    %v801 = vld [vmem:[#allocation7 + $0xd38] sm:$0xff]
    %v802 = vld [vmem:[#allocation7 + $0xd40] sm:$0xff]
    %v803 = vld [vmem:[#allocation7 + $0xd48] sm:$0xff]
    %v804 = vld [vmem:[#allocation7 + $0xd50] sm:$0xff]
    %v805 = vld [vmem:[#allocation7 + $0xd58] sm:$0xff]
    %v806 = vld [vmem:[#allocation7 + $0xd60] sm:$0xff]
    %v807 = vld [vmem:[#allocation7 + $0xd68] sm:$0xff]
    %v808 = vld [vmem:[#allocation7 + $0xd70] sm:$0xff]
    %v809 = vld [vmem:[#allocation7 + $0xd78] sm:$0xff]
    %v810 = vld [vmem:[#allocation7 + $0xd80] sm:$0xff]
    %v811 = vld [vmem:[#allocation7 + $0xd88] sm:$0xff]
    %v812 = vld [vmem:[#allocation7 + $0xd90] sm:$0xff]
    %v813 = vld [vmem:[#allocation7 + $0xd98] sm:$0xff]
    %v814 = vld [vmem:[#allocation7 + $0xda0] sm:$0xff]
    %v815 = vld [vmem:[#allocation7 + $0xda8] sm:$0xff]
    %v816 = vld [vmem:[#allocation7 + $0xdb0] sm:$0xff]
    %v817 = vld [vmem:[#allocation7 + $0xdb8] sm:$0xff]
    %v818 = vld [vmem:[#allocation7 + $0xdc0] sm:$0xff]
    %v819 = vld [vmem:[#allocation7 + $0xdc8] sm:$0xff]
    %v820 = vld [vmem:[#allocation7 + $0xdd0] sm:$0xff]
    %v821 = vld [vmem:[#allocation7 + $0xdd8] sm:$0xff]
    %v822 = vld [vmem:[#allocation7 + $0xde0] sm:$0xff]
    %v823 = vld [vmem:[#allocation7 + $0xde8] sm:$0xff]
    %v824 = vld [vmem:[#allocation7 + $0xdf0] sm:$0xff]
    %v825 = vld [vmem:[#allocation7 + $0xdf8] sm:$0xff]
    %v826 = vld [vmem:[#allocation7 + $0xe00] sm:$0xff]
    %v827 = vld [vmem:[#allocation7 + $0xe08] sm:$0xff]
    %v828 = vld [vmem:[#allocation7 + $0xe10] sm:$0xff]
    %v829 = vld [vmem:[#allocation7 + $0xe18] sm:$0xff]
    %v830 = vld [vmem:[#allocation7 + $0xe20] sm:$0xff]
    %v831 = vld [vmem:[#allocation7 + $0xe28] sm:$0xff]
    %v832 = vld [vmem:[#allocation7 + $0xe30] sm:$0xff]
    %v833 = vld [vmem:[#allocation7 + $0xe38] sm:$0xff]
    %v834 = vld [vmem:[#allocation7 + $0xe40] sm:$0xff]
    %v835 = vld [vmem:[#allocation7 + $0xe48] sm:$0xff]
    %v836 = vld [vmem:[#allocation7 + $0xe50] sm:$0xff]
    %v837 = vld [vmem:[#allocation7 + $0xe58] sm:$0xff]
    %v838 = vld [vmem:[#allocation7 + $0xe60] sm:$0xff]
    %v839 = vld [vmem:[#allocation7 + $0xe68] sm:$0xff]
    %v840 = vld [vmem:[#allocation7 + $0xe70] sm:$0xff]
    %v841 = vld [vmem:[#allocation7 + $0xe78] sm:$0xff]
    %v842 = vld [vmem:[#allocation7 + $0xe80] sm:$0xff]
    %v843 = vld [vmem:[#allocation7 + $0xe88] sm:$0xff]
    %v844 = vld [vmem:[#allocation7 + $0xe90] sm:$0xff]
    %v845 = vld [vmem:[#allocation7 + $0xe98] sm:$0xff]
    %v846 = vld [vmem:[#allocation7 + $0xea0] sm:$0xff]
    %v847 = vld [vmem:[#allocation7 + $0xea8] sm:$0xff]
    %v848 = vld [vmem:[#allocation7 + $0xeb0] sm:$0xff]
    %v849 = vld [vmem:[#allocation7 + $0xeb8] sm:$0xff]
    %v850 = vld [vmem:[#allocation7 + $0xec0] sm:$0xff]
    %v851 = vld [vmem:[#allocation7 + $0xec8] sm:$0xff]
    %v852 = vld [vmem:[#allocation7 + $0xed0] sm:$0xff]
    %v853 = vld [vmem:[#allocation7 + $0xed8] sm:$0xff]
    %v854 = vld [vmem:[#allocation7 + $0xee0] sm:$0xff]
    %v855 = vld [vmem:[#allocation7 + $0xee8] sm:$0xff]
    %v856 = vld [vmem:[#allocation7 + $0xef0] sm:$0xff]
    %v857 = vld [vmem:[#allocation7 + $0xef8] sm:$0xff]
    %v858 = vld [vmem:[#allocation7 + $0xf00] sm:$0xff]
    %v859 = vld [vmem:[#allocation7 + $0xf08] sm:$0xff]
    %v860 = vld [vmem:[#allocation7 + $0xf10] sm:$0xff]
    %v861 = vld [vmem:[#allocation7 + $0xf18] sm:$0xff]
    %v862 = vld [vmem:[#allocation7 + $0xf20] sm:$0xff]
    %v863 = vld [vmem:[#allocation7 + $0xf28] sm:$0xff]
    %v864 = vld [vmem:[#allocation7 + $0xf30] sm:$0xff]
    %v865 = vld [vmem:[#allocation7 + $0xf38] sm:$0xff]
    %v866 = vld [vmem:[#allocation7 + $0xf40] sm:$0xff]
    %v867 = vld [vmem:[#allocation7 + $0xf48] sm:$0xff]
    %v868 = vld [vmem:[#allocation7 + $0xf50] sm:$0xff]
    %v869 = vld [vmem:[#allocation7 + $0xf58] sm:$0xff]
    %v870 = vld [vmem:[#allocation7 + $0xf60] sm:$0xff]
    %v871 = vld [vmem:[#allocation7 + $0xf68] sm:$0xff]
    %v872 = vld [vmem:[#allocation7 + $0xf70] sm:$0xff]
    %v873 = vld [vmem:[#allocation7 + $0xf78] sm:$0xff]
    %v874 = vld [vmem:[#allocation7 + $0xf80] sm:$0xff]
    %v875 = vld [vmem:[#allocation7 + $0xf88] sm:$0xff]
    %v876 = vld [vmem:[#allocation7 + $0xf90] sm:$0xff]
    %v877 = vld [vmem:[#allocation7 + $0xf98] sm:$0xff]
    %v878 = vld [vmem:[#allocation7 + $0xfa0] sm:$0xff]
    %v879 = vld [vmem:[#allocation7 + $0xfa8] sm:$0xff]
    %v880 = vld [vmem:[#allocation7 + $0xfb0] sm:$0xff]
    %v881 = vld [vmem:[#allocation7 + $0xfb8] sm:$0xff]
    %v882 = vld [vmem:[#allocation7 + $0xfc0] sm:$0xff]
    %v883 = vld [vmem:[#allocation7 + $0xfc8] sm:$0xff]
    %v884 = vld [vmem:[#allocation7 + $0xfd0] sm:$0xff]
    %v885 = vld [vmem:[#allocation7 + $0xfd8] sm:$0xff]
    %v886 = vld [vmem:[#allocation7 + $0xfe0] sm:$0xff]
    %v887 = vld [vmem:[#allocation7 + $0xfe8] sm:$0xff]
    %v888 = vld [vmem:[#allocation7 + $0xff0] sm:$0xff]
    %v889 = vld [vmem:[#allocation7 + $0xff8] sm:$0xff]
    %v890 = vld [vmem:[#allocation7 + $0x1000] sm:$0xff]
    %v891 = vld [vmem:[#allocation7 + $0x1008] sm:$0xff]
    %v892 = vld [vmem:[#allocation7 + $0x1010] sm:$0xff]
    %v893 = vld [vmem:[#allocation7 + $0x1018] sm:$0xff]
    %v894 = vld [vmem:[#allocation7 + $0x1020] sm:$0xff]
    %v895 = vld [vmem:[#allocation7 + $0x1028] sm:$0xff]
    %v896 = vld [vmem:[#allocation7 + $0x1030] sm:$0xff]
    %v897 = vld [vmem:[#allocation7 + $0x1038] sm:$0xff]
    %v898 = vld [vmem:[#allocation7 + $0x1040] sm:$0xff]
    %v899 = vld [vmem:[#allocation7 + $0x1048] sm:$0xff]
    %v900 = vld [vmem:[#allocation7 + $0x1050] sm:$0xff]
    %v901 = vld [vmem:[#allocation7 + $0x1058] sm:$0xff]
    %v902 = vld [vmem:[#allocation7 + $0x1060] sm:$0xff]
    %v903 = vld [vmem:[#allocation7 + $0x1068] sm:$0xff]
    %v904 = vld [vmem:[#allocation7 + $0x1070] sm:$0xff]
    %v905 = vld [vmem:[#allocation7 + $0x1078] sm:$0xff]
    %v906 = vld [vmem:[#allocation7 + $0x1080] sm:$0xff]
    %v907 = vld [vmem:[#allocation7 + $0x1088] sm:$0xff]
    %v908 = vld [vmem:[#allocation7 + $0x1090] sm:$0xff]
    %v909 = vld [vmem:[#allocation7 + $0x1098] sm:$0xff]
    %v910 = vld [vmem:[#allocation7 + $0x10a0] sm:$0xff]
    %v911 = vld [vmem:[#allocation7 + $0x10a8] sm:$0xff]
    %v912 = vld [vmem:[#allocation7 + $0x10b0] sm:$0xff]
    %v913 = vld [vmem:[#allocation7 + $0x10b8] sm:$0xff]
    %v914 = vld [vmem:[#allocation7 + $0x10c0] sm:$0xff]
    %v915 = vld [vmem:[#allocation7 + $0x10c8] sm:$0xff]
    %v916 = vld [vmem:[#allocation7 + $0x10d0] sm:$0xff]
    %v917 = vld [vmem:[#allocation7 + $0x10d8] sm:$0xff]
    %v918 = vld [vmem:[#allocation7 + $0x10e0] sm:$0xff]
    %v919 = vld [vmem:[#allocation7 + $0x10e8] sm:$0xff]
    %v920 = vld [vmem:[#allocation7 + $0x10f0] sm:$0xff]
    %v921 = vld [vmem:[#allocation7 + $0x10f8] sm:$0xff]
    %v922 = vld [vmem:[#allocation7 + $0x1100] sm:$0xff]
    %v923 = vld [vmem:[#allocation7 + $0x1108] sm:$0xff]
    %v924 = vld [vmem:[#allocation7 + $0x1110] sm:$0xff]
    %v925 = vld [vmem:[#allocation7 + $0x1118] sm:$0xff]
    %v926 = vld [vmem:[#allocation7 + $0x1120] sm:$0xff]
    %v927 = vld [vmem:[#allocation7 + $0x1128] sm:$0xff]
    %v928 = vld [vmem:[#allocation7 + $0x1130] sm:$0xff]
    %v929 = vld [vmem:[#allocation7 + $0x1138] sm:$0xff]
    %v930 = vld [vmem:[#allocation7 + $0x1140] sm:$0xff]
    %v931 = vld [vmem:[#allocation7 + $0x1148] sm:$0xff]
    %v932 = vld [vmem:[#allocation7 + $0x1150] sm:$0xff]
    %v933 = vld [vmem:[#allocation7 + $0x1158] sm:$0xff]
    %v934 = vld [vmem:[#allocation7 + $0x1160] sm:$0xff]
    %v935 = vld [vmem:[#allocation7 + $0x1168] sm:$0xff]
    %v936 = vld [vmem:[#allocation7 + $0x1170] sm:$0xff]
    %v937 = vld [vmem:[#allocation7 + $0x1178] sm:$0xff]
    %v938 = vld [vmem:[#allocation7 + $0x1180] sm:$0xff]
    %v939 = vld [vmem:[#allocation7 + $0x1188] sm:$0xff]
    %v940 = vld [vmem:[#allocation7 + $0x1190] sm:$0xff]
    %v941 = vld [vmem:[#allocation7 + $0x1198] sm:$0xff]
    %v942 = vld [vmem:[#allocation7 + $0x11a0] sm:$0xff]
    %v943 = vld [vmem:[#allocation7 + $0x11a8] sm:$0xff]
    %v944 = vld [vmem:[#allocation7 + $0x11b0] sm:$0xff]
    %v945 = vld [vmem:[#allocation7 + $0x11b8] sm:$0xff]
    %v946 = vld [vmem:[#allocation7 + $0x11c0] sm:$0xff]
    %v947 = vld [vmem:[#allocation7 + $0x11c8] sm:$0xff]
    %v948 = vld [vmem:[#allocation7 + $0x11d0] sm:$0xff]
    %v949 = vld [vmem:[#allocation7 + $0x11d8] sm:$0xff]
    %v950 = vld [vmem:[#allocation7 + $0x11e0] sm:$0xff]
    %v951 = vld [vmem:[#allocation7 + $0x11e8] sm:$0xff]
    %v952 = vld [vmem:[#allocation7 + $0x11f0] sm:$0xff]
    %v953 = vld [vmem:[#allocation7 + $0x11f8] sm:$0xff]
    %v954 = vld [vmem:[#allocation7 + $0x1200] sm:$0xff]
    %v955 = vld [vmem:[#allocation7 + $0x1208] sm:$0xff]
    %v956 = vld [vmem:[#allocation7 + $0x1210] sm:$0xff]
    %v957 = vld [vmem:[#allocation7 + $0x1218] sm:$0xff]
    %v958 = vld [vmem:[#allocation7 + $0x1220] sm:$0xff]
    %v959 = vld [vmem:[#allocation7 + $0x1228] sm:$0xff]
    %v960 = vld [vmem:[#allocation7 + $0x1230] sm:$0xff]
    %v961 = vld [vmem:[#allocation7 + $0x1238] sm:$0xff]
    %v962 = vld [vmem:[#allocation7 + $0x1240] sm:$0xff]
    %v963 = vld [vmem:[#allocation7 + $0x1248] sm:$0xff]
    %v964 = vld [vmem:[#allocation7 + $0x1250] sm:$0xff]
    %v965 = vld [vmem:[#allocation7 + $0x1258] sm:$0xff]
    %v966 = vld [vmem:[#allocation7 + $0x1260] sm:$0xff]
    %v967 = vld [vmem:[#allocation7 + $0x1268] sm:$0xff]
    %v968 = vld [vmem:[#allocation7 + $0x1270] sm:$0xff]
    %v969 = vld [vmem:[#allocation7 + $0x1278] sm:$0xff]
    %v970 = vld [vmem:[#allocation7 + $0x1280] sm:$0xff]
    %v971 = vld [vmem:[#allocation7 + $0x1288] sm:$0xff]
    %v972 = vld [vmem:[#allocation7 + $0x1290] sm:$0xff]
    %v973 = vld [vmem:[#allocation7 + $0x1298] sm:$0xff]
    %v974 = vld [vmem:[#allocation7 + $0x12a0] sm:$0xff]
    %v975 = vld [vmem:[#allocation7 + $0x12a8] sm:$0xff]
    %v976 = vld [vmem:[#allocation7 + $0x12b0] sm:$0xff]
    %v977 = vld [vmem:[#allocation7 + $0x12b8] sm:$0xff]
    %v978 = vld [vmem:[#allocation7 + $0x12c0] sm:$0xff]
    %v979 = vld [vmem:[#allocation7 + $0x12c8] sm:$0xff]
    %v980 = vld [vmem:[#allocation7 + $0x12d0] sm:$0xff]
    %v981 = vld [vmem:[#allocation7 + $0x12d8] sm:$0xff]
    %v982 = vld [vmem:[#allocation7 + $0x12e0] sm:$0xff]
    %v983 = vld [vmem:[#allocation7 + $0x12e8] sm:$0xff]
    %v984 = vld [vmem:[#allocation7 + $0x12f0] sm:$0xff]
    %v985 = vld [vmem:[#allocation7 + $0x12f8] sm:$0xff]
    %v986 = vld [vmem:[#allocation7 + $0x1300] sm:$0xff]
    %v987 = vld [vmem:[#allocation7 + $0x1308] sm:$0xff]
    %v988 = vld [vmem:[#allocation7 + $0x1310] sm:$0xff]
    %v989 = vld [vmem:[#allocation7 + $0x1318] sm:$0xff]
    %v990 = vld [vmem:[#allocation7 + $0x1320] sm:$0xff]
    %v991 = vld [vmem:[#allocation7 + $0x1328] sm:$0xff]
    %v992 = vld [vmem:[#allocation7 + $0x1330] sm:$0xff]
    %v993 = vld [vmem:[#allocation7 + $0x1338] sm:$0xff]
    %v994 = vld [vmem:[#allocation7 + $0x1340] sm:$0xff]
    %v995 = vld [vmem:[#allocation7 + $0x1348] sm:$0xff]
    %v996 = vld [vmem:[#allocation7 + $0x1350] sm:$0xff]
    %v997 = vld [vmem:[#allocation7 + $0x1358] sm:$0xff]
    %v998 = vld [vmem:[#allocation7 + $0x1360] sm:$0xff]
    %v999 = vld [vmem:[#allocation7 + $0x1368] sm:$0xff]
    %v1000 = vld [vmem:[#allocation7 + $0x1370] sm:$0xff]
    %v1001 = vld [vmem:[#allocation7 + $0x1378] sm:$0xff]
    %v1002 = vld [vmem:[#allocation7 + $0x1380] sm:$0xff]
    %v1003 = vld [vmem:[#allocation7 + $0x1388] sm:$0xff]
    %v1004 = vld [vmem:[#allocation7 + $0x1390] sm:$0xff]
    %v1005 = vld [vmem:[#allocation7 + $0x1398] sm:$0xff]
    %v1006 = vld [vmem:[#allocation7 + $0x13a0] sm:$0xff]
    %v1007 = vld [vmem:[#allocation7 + $0x13a8] sm:$0xff]
    %v1008 = vld [vmem:[#allocation7 + $0x13b0] sm:$0xff]
    %v1009 = vld [vmem:[#allocation7 + $0x13b8] sm:$0xff]
    %v1010 = vld [vmem:[#allocation7 + $0x13c0] sm:$0xff]
    %v1011 = vld [vmem:[#allocation7 + $0x13c8] sm:$0xff]
    %v1012 = vld [vmem:[#allocation7 + $0x13d0] sm:$0xff]
    %v1013 = vld [vmem:[#allocation7 + $0x13d8] sm:$0xff]
    %v1014 = vld [vmem:[#allocation7 + $0x13e0] sm:$0xff]
    %v1015 = vld [vmem:[#allocation7 + $0x13e8] sm:$0xff]
    %v1016 = vld [vmem:[#allocation7 + $0x13f0] sm:$0xff]
    %v1017 = vld [vmem:[#allocation7 + $0x13f8] sm:$0xff]
    %v1018 = vld [vmem:[#allocation7 + $0x1408] sm:$0x1]
    %v1019 = vlaneseq
    %v1020 = vshrl.u32 %v1019, 7
    %v1021 = vsub.s32 0, %v1020
    %v1022 = vrot.slane %v1018, %v1021
    %1023 = vmatprep.subr.mxu0 0.0
    %1024 = vmatpush1.msra.mxu0 %v506
    %1025 = vmatprep.subr.mxu0 0.0
    %1026 = vmatpush1.msra.mxu0 %v507
    %1027 = vmatprep.subr.mxu0 0.0
    %1028 = vmatpush1.msra.mxu0 %v508
    %1029 = vmatprep.subr.mxu0 0.0
    %1030 = vmatpush1.msra.mxu0 %v509
    %1031 = vmatprep.subr.mxu0 0.0
    %1032 = vmatpush1.msra.mxu0 %v510
    %1033 = vmatprep.subr.mxu0 0.0
    %1034 = vmatpush1.msra.mxu0 %v511
    %1035 = vmatprep.subr.mxu0 0.0
    %1036 = vmatpush1.msra.mxu0 %v512
    %1037 = vmatprep.subr.mxu0 0.0
    %1038 = vmatpush1.msra.mxu0 %v513
    %1039 = vmatprep.subr.mxu0 0.0
    %1040 = vmatpush1.msra.mxu0 %v514
    %1041 = vmatprep.subr.mxu0 0.0
    %1042 = vmatpush1.msra.mxu0 %v515
    %1043 = vmatprep.subr.mxu0 0.0
    %1044 = vmatpush1.msra.mxu0 %v516
    %1045 = vmatprep.subr.mxu0 0.0
    %1046 = vmatpush1.msra.mxu0 %v517
    %1047 = vmatprep.subr.mxu0 0.0
    %1048 = vmatpush1.msra.mxu0 %v518
    %1049 = vmatprep.subr.mxu0 0.0
    %1050 = vmatpush1.msra.mxu0 %v519
    %1051 = vmatprep.subr.mxu0 0.0
    %1052 = vmatpush1.msra.mxu0 %v520
    %1053 = vmatprep.subr.mxu0 0.0
    %1054 = vmatpush1.msra.mxu0 %v521
    %1055 = vmatprep.subr.mxu0 0.0
    %1056 = vmatpush1.msra.mxu0 %v522
    %1057 = vmatprep.subr.mxu0 0.0
    %1058 = vmatpush1.msra.mxu0 %v523
    %1059 = vmatprep.subr.mxu0 0.0
    %1060 = vmatpush1.msra.mxu0 %v524
    %1061 = vmatprep.subr.mxu0 0.0
    %1062 = vmatpush1.msra.mxu0 %v525
    %1063 = vmatprep.subr.mxu0 0.0
    %1064 = vmatpush1.msra.mxu0 %v526
    %1065 = vmatprep.subr.mxu0 0.0
    %1066 = vmatpush1.msra.mxu0 %v527
    %1067 = vmatprep.subr.mxu0 0.0
    %1068 = vmatpush1.msra.mxu0 %v528
    %1069 = vmatprep.subr.mxu0 0.0
    %1070 = vmatpush1.msra.mxu0 %v529
    %1071 = vmatprep.subr.mxu0 0.0
    %1072 = vmatpush1.msra.mxu0 %v530
    %1073 = vmatprep.subr.mxu0 0.0
    %1074 = vmatpush1.msra.mxu0 %v531
    %1075 = vmatprep.subr.mxu0 0.0
    %1076 = vmatpush1.msra.mxu0 %v532
    %1077 = vmatprep.subr.mxu0 0.0
    %1078 = vmatpush1.msra.mxu0 %v533
    %1079 = vmatprep.subr.mxu0 0.0
    %1080 = vmatpush1.msra.mxu0 %v534
    %1081 = vmatprep.subr.mxu0 0.0
    %1082 = vmatpush1.msra.mxu0 %v535
    %1083 = vmatprep.subr.mxu0 0.0
    %1084 = vmatpush1.msra.mxu0 %v536
    %1085 = vmatprep.subr.mxu0 0.0
    %1086 = vmatpush1.msra.mxu0 %v537
    %1087 = vmatprep.mubr.f32.mxu0 %v61
    %1088 = vmatmul.mubr.f32.gmra.mrb[0].mxu0 %v60
    %v1089 = vpop.f32.mrb[0].mxu0
    %v1090 = vadd.f32 %v1022, %v1089
    %v1091 = vpop.f32.mrb[0].mxu0
    %1092 = vdwg.mxu0
    %1093 = vmatprep.subr.mxu0 0.0
    %1094 = vmatpush1.msra.mxu0 %v538
    %1095 = vmatprep.subr.mxu0 0.0
    %1096 = vmatpush1.msra.mxu0 %v539
    %1097 = vmatprep.subr.mxu0 0.0
    %1098 = vmatpush1.msra.mxu0 %v540
    %1099 = vmatprep.subr.mxu0 0.0
    %1100 = vmatpush1.msra.mxu0 %v541
    %1101 = vmatprep.subr.mxu0 0.0
    %1102 = vmatpush1.msra.mxu0 %v542
    %1103 = vmatprep.subr.mxu0 0.0
    %1104 = vmatpush1.msra.mxu0 %v543
    %1105 = vmatprep.subr.mxu0 0.0
    %1106 = vmatpush1.msra.mxu0 %v544
    %1107 = vmatprep.subr.mxu0 0.0
    %1108 = vmatpush1.msra.mxu0 %v545
    %1109 = vmatprep.subr.mxu0 0.0
    %1110 = vmatpush1.msra.mxu0 %v546
    %1111 = vmatprep.subr.mxu0 0.0
    %1112 = vmatpush1.msra.mxu0 %v547
    %1113 = vmatprep.subr.mxu0 0.0
    %1114 = vmatpush1.msra.mxu0 %v548
    %1115 = vmatprep.subr.mxu0 0.0
    %1116 = vmatpush1.msra.mxu0 %v549
    %1117 = vmatprep.subr.mxu0 0.0
    %1118 = vmatpush1.msra.mxu0 %v550
    %1119 = vmatprep.subr.mxu0 0.0
    %1120 = vmatpush1.msra.mxu0 %v551
    %1121 = vmatprep.subr.mxu0 0.0
    %1122 = vmatpush1.msra.mxu0 %v552
    %1123 = vmatprep.subr.mxu0 0.0
    %1124 = vmatpush1.msra.mxu0 %v553
    %1125 = vmatprep.subr.mxu0 0.0
    %1126 = vmatpush1.msra.mxu0 %v554
    %1127 = vmatprep.subr.mxu0 0.0
    %1128 = vmatpush1.msra.mxu0 %v555
    %1129 = vmatprep.subr.mxu0 0.0
    %1130 = vmatpush1.msra.mxu0 %v556
    %1131 = vmatprep.subr.mxu0 0.0
    %1132 = vmatpush1.msra.mxu0 %v557
    %1133 = vmatprep.subr.mxu0 0.0
    %1134 = vmatpush1.msra.mxu0 %v558
    %1135 = vmatprep.subr.mxu0 0.0
    %1136 = vmatpush1.msra.mxu0 %v559
    %1137 = vmatprep.subr.mxu0 0.0
    %1138 = vmatpush1.msra.mxu0 %v560
    %1139 = vmatprep.subr.mxu0 0.0
    %1140 = vmatpush1.msra.mxu0 %v561
    %1141 = vmatprep.subr.mxu0 0.0
    %1142 = vmatpush1.msra.mxu0 %v562
    %1143 = vmatprep.subr.mxu0 0.0
    %1144 = vmatpush1.msra.mxu0 %v563
    %1145 = vmatprep.subr.mxu0 0.0
    %1146 = vmatpush1.msra.mxu0 %v564
    %1147 = vmatprep.subr.mxu0 0.0
    %1148 = vmatpush1.msra.mxu0 %v565
    %1149 = vmatprep.subr.mxu0 0.0
    %1150 = vmatpush1.msra.mxu0 %v566
    %1151 = vmatprep.subr.mxu0 0.0
    %1152 = vmatpush1.msra.mxu0 %v567
    %1153 = vmatprep.subr.mxu0 0.0
    %1154 = vmatpush1.msra.mxu0 %v568
    %1155 = vmatprep.subr.mxu0 0.0
    %1156 = vmatpush1.msra.mxu0 %v569
    %1157 = vmatprep.mubr.f32.mxu0 %v63
    %1158 = vmatmul.mubr.f32.gmra.mrb[0].mxu0 %v62
    %v1159 = vpop.f32.mrb[0].mxu0
    %v1160 = vadd.f32 %v1090, %v1159
    %v1161 = vpop.f32.mrb[0].mxu0
    %1162 = vdwg.mxu0
    %1163 = vmatprep.subr.mxu0 0.0
    %1164 = vmatpush1.msra.mxu0 %v570
    %1165 = vmatprep.subr.mxu0 0.0
    %1166 = vmatpush1.msra.mxu0 %v571
    %1167 = vmatprep.subr.mxu0 0.0
    %1168 = vmatpush1.msra.mxu0 %v572
    %1169 = vmatprep.subr.mxu0 0.0
    %1170 = vmatpush1.msra.mxu0 %v573
    %1171 = vmatprep.subr.mxu0 0.0
    %1172 = vmatpush1.msra.mxu0 %v574
    %1173 = vmatprep.subr.mxu0 0.0
    %1174 = vmatpush1.msra.mxu0 %v575
    %1175 = vmatprep.subr.mxu0 0.0
    %1176 = vmatpush1.msra.mxu0 %v576
    %1177 = vmatprep.subr.mxu0 0.0
    %1178 = vmatpush1.msra.mxu0 %v577
    %1179 = vmatprep.subr.mxu0 0.0
    %1180 = vmatpush1.msra.mxu0 %v578
    %1181 = vmatprep.subr.mxu0 0.0
    %1182 = vmatpush1.msra.mxu0 %v579
    %1183 = vmatprep.subr.mxu0 0.0
    %1184 = vmatpush1.msra.mxu0 %v580
    %1185 = vmatprep.subr.mxu0 0.0
    %1186 = vmatpush1.msra.mxu0 %v581
    %1187 = vmatprep.subr.mxu0 0.0
    %1188 = vmatpush1.msra.mxu0 %v582
    %1189 = vmatprep.subr.mxu0 0.0
    %1190 = vmatpush1.msra.mxu0 %v583
    %1191 = vmatprep.subr.mxu0 0.0
    %1192 = vmatpush1.msra.mxu0 %v584
    %1193 = vmatprep.subr.mxu0 0.0
    %1194 = vmatpush1.msra.mxu0 %v585
    %1195 = vmatprep.subr.mxu0 0.0
    %1196 = vmatpush1.msra.mxu0 %v586
    %1197 = vmatprep.subr.mxu0 0.0
    %1198 = vmatpush1.msra.mxu0 %v587
    %1199 = vmatprep.subr.mxu0 0.0
    %1200 = vmatpush1.msra.mxu0 %v588
    %1201 = vmatprep.subr.mxu0 0.0
    %1202 = vmatpush1.msra.mxu0 %v589
    %1203 = vmatprep.subr.mxu0 0.0
    %1204 = vmatpush1.msra.mxu0 %v590
    %1205 = vmatprep.subr.mxu0 0.0
    %1206 = vmatpush1.msra.mxu0 %v591
    %1207 = vmatprep.subr.mxu0 0.0
    %1208 = vmatpush1.msra.mxu0 %v592
    %1209 = vmatprep.subr.mxu0 0.0
    %1210 = vmatpush1.msra.mxu0 %v593
    %1211 = vmatprep.subr.mxu0 0.0
    %1212 = vmatpush1.msra.mxu0 %v594
    %1213 = vmatprep.subr.mxu0 0.0
    %1214 = vmatpush1.msra.mxu0 %v595
    %1215 = vmatprep.subr.mxu0 0.0
    %1216 = vmatpush1.msra.mxu0 %v596
    %1217 = vmatprep.subr.mxu0 0.0
    %1218 = vmatpush1.msra.mxu0 %v597
    %1219 = vmatprep.subr.mxu0 0.0
    %1220 = vmatpush1.msra.mxu0 %v598
    %1221 = vmatprep.subr.mxu0 0.0
    %1222 = vmatpush1.msra.mxu0 %v599
    %1223 = vmatprep.subr.mxu0 0.0
    %1224 = vmatpush1.msra.mxu0 %v600
    %1225 = vmatprep.subr.mxu0 0.0
    %1226 = vmatpush1.msra.mxu0 %v601
    %1227 = vmatprep.mubr.f32.mxu0 %v65
    %1228 = vmatmul.mubr.f32.gmra.mrb[0].mxu0 %v64
    %v1229 = vpop.f32.mrb[0].mxu0
    %v1230 = vadd.f32 %v1160, %v1229
    %v1231 = vpop.f32.mrb[0].mxu0
    %1232 = vdwg.mxu0
    %1233 = vmatprep.subr.mxu0 0.0
    %1234 = vmatpush1.msra.mxu0 %v602
    %1235 = vmatprep.subr.mxu0 0.0
    %1236 = vmatpush1.msra.mxu0 %v603
    %1237 = vmatprep.subr.mxu0 0.0
    %1238 = vmatpush1.msra.mxu0 %v604
    %1239 = vmatprep.subr.mxu0 0.0
    %1240 = vmatpush1.msra.mxu0 %v605
    %1241 = vmatprep.subr.mxu0 0.0
    %1242 = vmatpush1.msra.mxu0 %v606
    %1243 = vmatprep.subr.mxu0 0.0
    %1244 = vmatpush1.msra.mxu0 %v607
    %1245 = vmatprep.subr.mxu0 0.0
    %1246 = vmatpush1.msra.mxu0 %v608
    %1247 = vmatprep.subr.mxu0 0.0
    %1248 = vmatpush1.msra.mxu0 %v609
    %1249 = vmatprep.subr.mxu0 0.0
    %1250 = vmatpush1.msra.mxu0 %v610
    %1251 = vmatprep.subr.mxu0 0.0
    %1252 = vmatpush1.msra.mxu0 %v611
    %1253 = vmatprep.subr.mxu0 0.0
    %1254 = vmatpush1.msra.mxu0 %v612
    %1255 = vmatprep.subr.mxu0 0.0
    %1256 = vmatpush1.msra.mxu0 %v613
    %1257 = vmatprep.subr.mxu0 0.0
    %1258 = vmatpush1.msra.mxu0 %v614
    %1259 = vmatprep.subr.mxu0 0.0
    %1260 = vmatpush1.msra.mxu0 %v615
    %1261 = vmatprep.subr.mxu0 0.0
    %1262 = vmatpush1.msra.mxu0 %v616
    %1263 = vmatprep.subr.mxu0 0.0
    %1264 = vmatpush1.msra.mxu0 %v617
    %1265 = vmatprep.subr.mxu0 0.0
    %1266 = vmatpush1.msra.mxu0 %v618
    %1267 = vmatprep.subr.mxu0 0.0
    %1268 = vmatpush1.msra.mxu0 %v619
    %1269 = vmatprep.subr.mxu0 0.0
    %1270 = vmatpush1.msra.mxu0 %v620
    %1271 = vmatprep.subr.mxu0 0.0
    %1272 = vmatpush1.msra.mxu0 %v621
    %1273 = vmatprep.subr.mxu0 0.0
    %1274 = vmatpush1.msra.mxu0 %v622
    %1275 = vmatprep.subr.mxu0 0.0
    %1276 = vmatpush1.msra.mxu0 %v623
    %1277 = vmatprep.subr.mxu0 0.0
    %1278 = vmatpush1.msra.mxu0 %v624
    %1279 = vmatprep.subr.mxu0 0.0
    %1280 = vmatpush1.msra.mxu0 %v625
    %1281 = vmatprep.subr.mxu0 0.0
    %1282 = vmatpush1.msra.mxu0 %v626
    %1283 = vmatprep.subr.mxu0 0.0
    %1284 = vmatpush1.msra.mxu0 %v627
    %1285 = vmatprep.subr.mxu0 0.0
    %1286 = vmatpush1.msra.mxu0 %v628
    %1287 = vmatprep.subr.mxu0 0.0
    %1288 = vmatpush1.msra.mxu0 %v629
    %1289 = vmatprep.subr.mxu0 0.0
    %1290 = vmatpush1.msra.mxu0 %v630
    %1291 = vmatprep.subr.mxu0 0.0
    %1292 = vmatpush1.msra.mxu0 %v631
    %1293 = vmatprep.subr.mxu0 0.0
    %1294 = vmatpush1.msra.mxu0 %v632
    %1295 = vmatprep.subr.mxu0 0.0
    %1296 = vmatpush1.msra.mxu0 %v633
    %1297 = vmatprep.mubr.f32.mxu0 %v67
    %1298 = vmatmul.mubr.f32.gmra.mrb[0].mxu0 %v66
    %v1299 = vpop.f32.mrb[0].mxu0
    %v1300 = vadd.f32 %v1230, %v1299
    %v1301 = vpop.f32.mrb[0].mxu0
    %1302 = vdwg.mxu0
    %1303 = vmatprep.subr.mxu0 0.0
    %1304 = vmatpush1.msra.mxu0 %v634
    %1305 = vmatprep.subr.mxu0 0.0
    %1306 = vmatpush1.msra.mxu0 %v635
    %1307 = vmatprep.subr.mxu0 0.0
    %1308 = vmatpush1.msra.mxu0 %v636
    %1309 = vmatprep.subr.mxu0 0.0
    %1310 = vmatpush1.msra.mxu0 %v637
    %1311 = vmatprep.subr.mxu0 0.0
    %1312 = vmatpush1.msra.mxu0 %v638
    %1313 = vmatprep.subr.mxu0 0.0
    %1314 = vmatpush1.msra.mxu0 %v639
    %1315 = vmatprep.subr.mxu0 0.0
    %1316 = vmatpush1.msra.mxu0 %v640
    %1317 = vmatprep.subr.mxu0 0.0
    %1318 = vmatpush1.msra.mxu0 %v641
    %1319 = vmatprep.subr.mxu0 0.0
    %1320 = vmatpush1.msra.mxu0 %v642
    %1321 = vmatprep.subr.mxu0 0.0
    %1322 = vmatpush1.msra.mxu0 %v643
    %1323 = vmatprep.subr.mxu0 0.0
    %1324 = vmatpush1.msra.mxu0 %v644
    %1325 = vmatprep.subr.mxu0 0.0
    %1326 = vmatpush1.msra.mxu0 %v645
    %1327 = vmatprep.subr.mxu0 0.0
    %1328 = vmatpush1.msra.mxu0 %v646
    %1329 = vmatprep.subr.mxu0 0.0
    %1330 = vmatpush1.msra.mxu0 %v647
    %1331 = vmatprep.subr.mxu0 0.0
    %1332 = vmatpush1.msra.mxu0 %v648
    %1333 = vmatprep.subr.mxu0 0.0
    %1334 = vmatpush1.msra.mxu0 %v649
    %1335 = vmatprep.subr.mxu0 0.0
    %1336 = vmatpush1.msra.mxu0 %v650
    %1337 = vmatprep.subr.mxu0 0.0
    %1338 = vmatpush1.msra.mxu0 %v651
    %1339 = vmatprep.subr.mxu0 0.0
    %1340 = vmatpush1.msra.mxu0 %v652
    %1341 = vmatprep.subr.mxu0 0.0
    %1342 = vmatpush1.msra.mxu0 %v653
    %1343 = vmatprep.subr.mxu0 0.0
    %1344 = vmatpush1.msra.mxu0 %v654
    %1345 = vmatprep.subr.mxu0 0.0
    %1346 = vmatpush1.msra.mxu0 %v655
    %1347 = vmatprep.subr.mxu0 0.0
    %1348 = vmatpush1.msra.mxu0 %v656
    %1349 = vmatprep.subr.mxu0 0.0
    %1350 = vmatpush1.msra.mxu0 %v657
    %1351 = vmatprep.subr.mxu0 0.0
    %1352 = vmatpush1.msra.mxu0 %v658
    %1353 = vmatprep.subr.mxu0 0.0
    %1354 = vmatpush1.msra.mxu0 %v659
    %1355 = vmatprep.subr.mxu0 0.0
    %1356 = vmatpush1.msra.mxu0 %v660
    %1357 = vmatprep.subr.mxu0 0.0
    %1358 = vmatpush1.msra.mxu0 %v661
    %1359 = vmatprep.subr.mxu0 0.0
    %1360 = vmatpush1.msra.mxu0 %v662
    %1361 = vmatprep.subr.mxu0 0.0
    %1362 = vmatpush1.msra.mxu0 %v663
    %1363 = vmatprep.subr.mxu0 0.0
    %1364 = vmatpush1.msra.mxu0 %v664
    %1365 = vmatprep.subr.mxu0 0.0
    %1366 = vmatpush1.msra.mxu0 %v665
    %1367 = vmatprep.mubr.f32.mxu0 %v69
    %1368 = vmatmul.mubr.f32.gmra.mrb[0].mxu0 %v68
    %v1369 = vpop.f32.mrb[0].mxu0
    %v1370 = vadd.f32 %v1300, %v1369
    %v1371 = vpop.f32.mrb[0].mxu0
    %1372 = vdwg.mxu0
    %1373 = vmatprep.subr.mxu0 0.0
    %1374 = vmatpush1.msra.mxu0 %v666
    %1375 = vmatprep.subr.mxu0 0.0
    %1376 = vmatpush1.msra.mxu0 %v667
    %1377 = vmatprep.subr.mxu0 0.0
    %1378 = vmatpush1.msra.mxu0 %v668
    %1379 = vmatprep.subr.mxu0 0.0
    %1380 = vmatpush1.msra.mxu0 %v669
    %1381 = vmatprep.subr.mxu0 0.0
    %1382 = vmatpush1.msra.mxu0 %v670
    %1383 = vmatprep.subr.mxu0 0.0
    %1384 = vmatpush1.msra.mxu0 %v671
    %1385 = vmatprep.subr.mxu0 0.0
    %1386 = vmatpush1.msra.mxu0 %v672
    %1387 = vmatprep.subr.mxu0 0.0
    %1388 = vmatpush1.msra.mxu0 %v673
    %1389 = vmatprep.subr.mxu0 0.0
    %1390 = vmatpush1.msra.mxu0 %v674
    %1391 = vmatprep.subr.mxu0 0.0
    %1392 = vmatpush1.msra.mxu0 %v675
    %1393 = vmatprep.subr.mxu0 0.0
    %1394 = vmatpush1.msra.mxu0 %v676
    %1395 = vmatprep.subr.mxu0 0.0
    %1396 = vmatpush1.msra.mxu0 %v677
    %1397 = vmatprep.subr.mxu0 0.0
    %1398 = vmatpush1.msra.mxu0 %v678
    %1399 = vmatprep.subr.mxu0 0.0
    %1400 = vmatpush1.msra.mxu0 %v679
    %1401 = vmatprep.subr.mxu0 0.0
    %1402 = vmatpush1.msra.mxu0 %v680
    %1403 = vmatprep.subr.mxu0 0.0
    %1404 = vmatpush1.msra.mxu0 %v681
    %1405 = vmatprep.subr.mxu0 0.0
    %1406 = vmatpush1.msra.mxu0 %v682
    %1407 = vmatprep.subr.mxu0 0.0
    %1408 = vmatpush1.msra.mxu0 %v683
    %1409 = vmatprep.subr.mxu0 0.0
    %1410 = vmatpush1.msra.mxu0 %v684
    %1411 = vmatprep.subr.mxu0 0.0
    %1412 = vmatpush1.msra.mxu0 %v685
    %1413 = vmatprep.subr.mxu0 0.0
    %1414 = vmatpush1.msra.mxu0 %v686
    %1415 = vmatprep.subr.mxu0 0.0
    %1416 = vmatpush1.msra.mxu0 %v687
    %1417 = vmatprep.subr.mxu0 0.0
    %1418 = vmatpush1.msra.mxu0 %v688
    %1419 = vmatprep.subr.mxu0 0.0
    %1420 = vmatpush1.msra.mxu0 %v689
    %1421 = vmatprep.subr.mxu0 0.0
    %1422 = vmatpush1.msra.mxu0 %v690
    %1423 = vmatprep.subr.mxu0 0.0
    %1424 = vmatpush1.msra.mxu0 %v691
    %1425 = vmatprep.subr.mxu0 0.0
    %1426 = vmatpush1.msra.mxu0 %v692
    %1427 = vmatprep.subr.mxu0 0.0
    %1428 = vmatpush1.msra.mxu0 %v693
    %1429 = vmatprep.subr.mxu0 0.0
    %1430 = vmatpush1.msra.mxu0 %v694
    %1431 = vmatprep.subr.mxu0 0.0
    %1432 = vmatpush1.msra.mxu0 %v695
    %1433 = vmatprep.subr.mxu0 0.0
    %1434 = vmatpush1.msra.mxu0 %v696
    %1435 = vmatprep.subr.mxu0 0.0
    %1436 = vmatpush1.msra.mxu0 %v697
    %1437 = vmatprep.mubr.f32.mxu0 %v71
    %1438 = vmatmul.mubr.f32.gmra.mrb[0].mxu0 %v70
    %v1439 = vpop.f32.mrb[0].mxu0
    %v1440 = vadd.f32 %v1370, %v1439
    %v1441 = vpop.f32.mrb[0].mxu0
    %1442 = vdwg.mxu0
    %1443 = vmatprep.subr.mxu0 0.0
    %1444 = vmatpush1.msra.mxu0 %v698
    %1445 = vmatprep.subr.mxu0 0.0
    %1446 = vmatpush1.msra.mxu0 %v699
    %1447 = vmatprep.subr.mxu0 0.0
    %1448 = vmatpush1.msra.mxu0 %v700
    %1449 = vmatprep.subr.mxu0 0.0
    %1450 = vmatpush1.msra.mxu0 %v701
    %1451 = vmatprep.subr.mxu0 0.0
    %1452 = vmatpush1.msra.mxu0 %v702
    %1453 = vmatprep.subr.mxu0 0.0
    %1454 = vmatpush1.msra.mxu0 %v703
    %1455 = vmatprep.subr.mxu0 0.0
    %1456 = vmatpush1.msra.mxu0 %v704
    %1457 = vmatprep.subr.mxu0 0.0
    %1458 = vmatpush1.msra.mxu0 %v705
    %1459 = vmatprep.subr.mxu0 0.0
    %1460 = vmatpush1.msra.mxu0 %v706
    %1461 = vmatprep.subr.mxu0 0.0
    %1462 = vmatpush1.msra.mxu0 %v707
    %1463 = vmatprep.subr.mxu0 0.0
    %1464 = vmatpush1.msra.mxu0 %v708
    %1465 = vmatprep.subr.mxu0 0.0
    %1466 = vmatpush1.msra.mxu0 %v709
    %1467 = vmatprep.subr.mxu0 0.0
    %1468 = vmatpush1.msra.mxu0 %v710
    %1469 = vmatprep.subr.mxu0 0.0
    %1470 = vmatpush1.msra.mxu0 %v711
    %1471 = vmatprep.subr.mxu0 0.0
    %1472 = vmatpush1.msra.mxu0 %v712
    %1473 = vmatprep.subr.mxu0 0.0
    %1474 = vmatpush1.msra.mxu0 %v713
    %1475 = vmatprep.subr.mxu0 0.0
    %1476 = vmatpush1.msra.mxu0 %v714
    %1477 = vmatprep.subr.mxu0 0.0
    %1478 = vmatpush1.msra.mxu0 %v715
    %1479 = vmatprep.subr.mxu0 0.0
    %1480 = vmatpush1.msra.mxu0 %v716
    %1481 = vmatprep.subr.mxu0 0.0
    %1482 = vmatpush1.msra.mxu0 %v717
    %1483 = vmatprep.subr.mxu0 0.0
    %1484 = vmatpush1.msra.mxu0 %v718
    %1485 = vmatprep.subr.mxu0 0.0
    %1486 = vmatpush1.msra.mxu0 %v719
    %1487 = vmatprep.subr.mxu0 0.0
    %1488 = vmatpush1.msra.mxu0 %v720
    %1489 = vmatprep.subr.mxu0 0.0
    %1490 = vmatpush1.msra.mxu0 %v721
    %1491 = vmatprep.subr.mxu0 0.0
    %1492 = vmatpush1.msra.mxu0 %v722
    %1493 = vmatprep.subr.mxu0 0.0
    %1494 = vmatpush1.msra.mxu0 %v723
    %1495 = vmatprep.subr.mxu0 0.0
    %1496 = vmatpush1.msra.mxu0 %v724
    %1497 = vmatprep.subr.mxu0 0.0
    %1498 = vmatpush1.msra.mxu0 %v725
    %1499 = vmatprep.subr.mxu0 0.0
    %1500 = vmatpush1.msra.mxu0 %v726
    %1501 = vmatprep.subr.mxu0 0.0
    %1502 = vmatpush1.msra.mxu0 %v727
    %1503 = vmatprep.subr.mxu0 0.0
    %1504 = vmatpush1.msra.mxu0 %v728
    %1505 = vmatprep.subr.mxu0 0.0
    %1506 = vmatpush1.msra.mxu0 %v729
    %1507 = vmatprep.mubr.f32.mxu0 %v73
    %1508 = vmatmul.mubr.f32.gmra.mrb[0].mxu0 %v72
    %v1509 = vpop.f32.mrb[0].mxu0
    %v1510 = vadd.f32 %v1440, %v1509
    %v1511 = vpop.f32.mrb[0].mxu0
    %1512 = vdwg.mxu0
    %1513 = vmatprep.subr.mxu0 0.0
    %1514 = vmatpush1.msra.mxu0 %v730
    %1515 = vmatprep.subr.mxu0 0.0
    %1516 = vmatpush1.msra.mxu0 %v731
    %1517 = vmatprep.subr.mxu0 0.0
    %1518 = vmatpush1.msra.mxu0 %v732
    %1519 = vmatprep.subr.mxu0 0.0
    %1520 = vmatpush1.msra.mxu0 %v733
    %1521 = vmatprep.subr.mxu0 0.0
    %1522 = vmatpush1.msra.mxu0 %v734
    %1523 = vmatprep.subr.mxu0 0.0
    %1524 = vmatpush1.msra.mxu0 %v735
    %1525 = vmatprep.subr.mxu0 0.0
    %1526 = vmatpush1.msra.mxu0 %v736
    %1527 = vmatprep.subr.mxu0 0.0
    %1528 = vmatpush1.msra.mxu0 %v737
    %1529 = vmatprep.subr.mxu0 0.0
    %1530 = vmatpush1.msra.mxu0 %v738
    %1531 = vmatprep.subr.mxu0 0.0
    %1532 = vmatpush1.msra.mxu0 %v739
    %1533 = vmatprep.subr.mxu0 0.0
    %1534 = vmatpush1.msra.mxu0 %v740
    %1535 = vmatprep.subr.mxu0 0.0
    %1536 = vmatpush1.msra.mxu0 %v741
    %1537 = vmatprep.subr.mxu0 0.0
    %1538 = vmatpush1.msra.mxu0 %v742
    %1539 = vmatprep.subr.mxu0 0.0
    %1540 = vmatpush1.msra.mxu0 %v743
    %1541 = vmatprep.subr.mxu0 0.0
    %1542 = vmatpush1.msra.mxu0 %v744
    %1543 = vmatprep.subr.mxu0 0.0
    %1544 = vmatpush1.msra.mxu0 %v745
    %1545 = vmatprep.subr.mxu0 0.0
    %1546 = vmatpush1.msra.mxu0 %v746
    %1547 = vmatprep.subr.mxu0 0.0
    %1548 = vmatpush1.msra.mxu0 %v747
    %1549 = vmatprep.subr.mxu0 0.0
    %1550 = vmatpush1.msra.mxu0 %v748
    %1551 = vmatprep.subr.mxu0 0.0
    %1552 = vmatpush1.msra.mxu0 %v749
    %1553 = vmatprep.subr.mxu0 0.0
    %1554 = vmatpush1.msra.mxu0 %v750
    %1555 = vmatprep.subr.mxu0 0.0
    %1556 = vmatpush1.msra.mxu0 %v751
    %1557 = vmatprep.subr.mxu0 0.0
    %1558 = vmatpush1.msra.mxu0 %v752
    %1559 = vmatprep.subr.mxu0 0.0
    %1560 = vmatpush1.msra.mxu0 %v753
    %1561 = vmatprep.subr.mxu0 0.0
    %1562 = vmatpush1.msra.mxu0 %v754
    %1563 = vmatprep.subr.mxu0 0.0
    %1564 = vmatpush1.msra.mxu0 %v755
    %1565 = vmatprep.subr.mxu0 0.0
    %1566 = vmatpush1.msra.mxu0 %v756
    %1567 = vmatprep.subr.mxu0 0.0
    %1568 = vmatpush1.msra.mxu0 %v757
    %1569 = vmatprep.subr.mxu0 0.0
    %1570 = vmatpush1.msra.mxu0 %v758
    %1571 = vmatprep.subr.mxu0 0.0
    %1572 = vmatpush1.msra.mxu0 %v759
    %1573 = vmatprep.subr.mxu0 0.0
    %1574 = vmatpush1.msra.mxu0 %v760
    %1575 = vmatprep.subr.mxu0 0.0
    %1576 = vmatpush1.msra.mxu0 %v761
    %1577 = vmatprep.mubr.f32.mxu0 %v75
    %1578 = vmatmul.mubr.f32.gmra.mrb[0].mxu0 %v74
    %v1579 = vpop.f32.mrb[0].mxu0
    %v1580 = vadd.f32 %v1510, %v1579
    %v1581 = vpop.f32.mrb[0].mxu0
    %1582 = vdwg.mxu0
    %1583 = vmatprep.subr.mxu0 0.0
    %1584 = vmatpush1.msra.mxu0 %v762
    %1585 = vmatprep.subr.mxu0 0.0
    %1586 = vmatpush1.msra.mxu0 %v763
    %1587 = vmatprep.subr.mxu0 0.0
    %1588 = vmatpush1.msra.mxu0 %v764
    %1589 = vmatprep.subr.mxu0 0.0
    %1590 = vmatpush1.msra.mxu0 %v765
    %1591 = vmatprep.subr.mxu0 0.0
    %1592 = vmatpush1.msra.mxu0 %v766
    %1593 = vmatprep.subr.mxu0 0.0
    %1594 = vmatpush1.msra.mxu0 %v767
    %1595 = vmatprep.subr.mxu0 0.0
    %1596 = vmatpush1.msra.mxu0 %v768
    %1597 = vmatprep.subr.mxu0 0.0
    %1598 = vmatpush1.msra.mxu0 %v769
    %1599 = vmatprep.subr.mxu0 0.0
    %1600 = vmatpush1.msra.mxu0 %v770
    %1601 = vmatprep.subr.mxu0 0.0
    %1602 = vmatpush1.msra.mxu0 %v771
    %1603 = vmatprep.subr.mxu0 0.0
    %1604 = vmatpush1.msra.mxu0 %v772
    %1605 = vmatprep.subr.mxu0 0.0
    %1606 = vmatpush1.msra.mxu0 %v773
    %1607 = vmatprep.subr.mxu0 0.0
    %1608 = vmatpush1.msra.mxu0 %v774
    %1609 = vmatprep.subr.mxu0 0.0
    %1610 = vmatpush1.msra.mxu0 %v775
    %1611 = vmatprep.subr.mxu0 0.0
    %1612 = vmatpush1.msra.mxu0 %v776
    %1613 = vmatprep.subr.mxu0 0.0
    %1614 = vmatpush1.msra.mxu0 %v777
    %1615 = vmatprep.subr.mxu0 0.0
    %1616 = vmatpush1.msra.mxu0 %v778
    %1617 = vmatprep.subr.mxu0 0.0
    %1618 = vmatpush1.msra.mxu0 %v779
    %1619 = vmatprep.subr.mxu0 0.0
    %1620 = vmatpush1.msra.mxu0 %v780
    %1621 = vmatprep.subr.mxu0 0.0
    %1622 = vmatpush1.msra.mxu0 %v781
    %1623 = vmatprep.subr.mxu0 0.0
    %1624 = vmatpush1.msra.mxu0 %v782
    %1625 = vmatprep.subr.mxu0 0.0
    %1626 = vmatpush1.msra.mxu0 %v783
    %1627 = vmatprep.subr.mxu0 0.0
    %1628 = vmatpush1.msra.mxu0 %v784
    %1629 = vmatprep.subr.mxu0 0.0
    %1630 = vmatpush1.msra.mxu0 %v785
    %1631 = vmatprep.subr.mxu0 0.0
    %1632 = vmatpush1.msra.mxu0 %v786
    %1633 = vmatprep.subr.mxu0 0.0
    %1634 = vmatpush1.msra.mxu0 %v787
    %1635 = vmatprep.subr.mxu0 0.0
    %1636 = vmatpush1.msra.mxu0 %v788
    %1637 = vmatprep.subr.mxu0 0.0
    %1638 = vmatpush1.msra.mxu0 %v789
    %1639 = vmatprep.subr.mxu0 0.0
    %1640 = vmatpush1.msra.mxu0 %v790
    %1641 = vmatprep.subr.mxu0 0.0
    %1642 = vmatpush1.msra.mxu0 %v791
    %1643 = vmatprep.subr.mxu0 0.0
    %1644 = vmatpush1.msra.mxu0 %v792
    %1645 = vmatprep.subr.mxu0 0.0
    %1646 = vmatpush1.msra.mxu0 %v793
    %1647 = vmatprep.mubr.f32.mxu0 %v77
    %1648 = vmatmul.mubr.f32.gmra.mrb[0].mxu0 %v76
    %v1649 = vpop.f32.mrb[0].mxu0
    %v1650 = vadd.f32 %v1580, %v1649
    %v1651 = vpop.f32.mrb[0].mxu0
    %1652 = vdwg.mxu0
    %1653 = vmatprep.subr.mxu0 0.0
    %1654 = vmatpush1.msra.mxu0 %v794
    %1655 = vmatprep.subr.mxu0 0.0
    %1656 = vmatpush1.msra.mxu0 %v795
    %1657 = vmatprep.subr.mxu0 0.0
    %1658 = vmatpush1.msra.mxu0 %v796
    %1659 = vmatprep.subr.mxu0 0.0
    %1660 = vmatpush1.msra.mxu0 %v797
    %1661 = vmatprep.subr.mxu0 0.0
    %1662 = vmatpush1.msra.mxu0 %v798
    %1663 = vmatprep.subr.mxu0 0.0
    %1664 = vmatpush1.msra.mxu0 %v799
    %1665 = vmatprep.subr.mxu0 0.0
    %1666 = vmatpush1.msra.mxu0 %v800
    %1667 = vmatprep.subr.mxu0 0.0
    %1668 = vmatpush1.msra.mxu0 %v801
    %1669 = vmatprep.subr.mxu0 0.0
    %1670 = vmatpush1.msra.mxu0 %v802
    %1671 = vmatprep.subr.mxu0 0.0
    %1672 = vmatpush1.msra.mxu0 %v803
    %1673 = vmatprep.subr.mxu0 0.0
    %1674 = vmatpush1.msra.mxu0 %v804
    %1675 = vmatprep.subr.mxu0 0.0
    %1676 = vmatpush1.msra.mxu0 %v805
    %1677 = vmatprep.subr.mxu0 0.0
    %1678 = vmatpush1.msra.mxu0 %v806
    %1679 = vmatprep.subr.mxu0 0.0
    %1680 = vmatpush1.msra.mxu0 %v807
    %1681 = vmatprep.subr.mxu0 0.0
    %1682 = vmatpush1.msra.mxu0 %v808
    %1683 = vmatprep.subr.mxu0 0.0
    %1684 = vmatpush1.msra.mxu0 %v809
    %1685 = vmatprep.subr.mxu0 0.0
    %1686 = vmatpush1.msra.mxu0 %v810
    %1687 = vmatprep.subr.mxu0 0.0
    %1688 = vmatpush1.msra.mxu0 %v811
    %1689 = vmatprep.subr.mxu0 0.0
    %1690 = vmatpush1.msra.mxu0 %v812
    %1691 = vmatprep.subr.mxu0 0.0
    %1692 = vmatpush1.msra.mxu0 %v813
    %1693 = vmatprep.subr.mxu0 0.0
    %1694 = vmatpush1.msra.mxu0 %v814
    %1695 = vmatprep.subr.mxu0 0.0
    %1696 = vmatpush1.msra.mxu0 %v815
    %1697 = vmatprep.subr.mxu0 0.0
    %1698 = vmatpush1.msra.mxu0 %v816
    %1699 = vmatprep.subr.mxu0 0.0
    %1700 = vmatpush1.msra.mxu0 %v817
    %1701 = vmatprep.subr.mxu0 0.0
    %1702 = vmatpush1.msra.mxu0 %v818
    %1703 = vmatprep.subr.mxu0 0.0
    %1704 = vmatpush1.msra.mxu0 %v819
    %1705 = vmatprep.subr.mxu0 0.0
    %1706 = vmatpush1.msra.mxu0 %v820
    %1707 = vmatprep.subr.mxu0 0.0
    %1708 = vmatpush1.msra.mxu0 %v821
    %1709 = vmatprep.subr.mxu0 0.0
    %1710 = vmatpush1.msra.mxu0 %v822
    %1711 = vmatprep.subr.mxu0 0.0
    %1712 = vmatpush1.msra.mxu0 %v823
    %1713 = vmatprep.subr.mxu0 0.0
    %1714 = vmatpush1.msra.mxu0 %v824
    %1715 = vmatprep.subr.mxu0 0.0
    %1716 = vmatpush1.msra.mxu0 %v825
    %1717 = vmatprep.mubr.f32.mxu0 %v79
    %1718 = vmatmul.mubr.f32.gmra.mrb[0].mxu0 %v78
    %v1719 = vpop.f32.mrb[0].mxu0
    %v1720 = vadd.f32 %v1650, %v1719
    %v1721 = vpop.f32.mrb[0].mxu0
    %1722 = vdwg.mxu0
    %1723 = vmatprep.subr.mxu0 0.0
    %1724 = vmatpush1.msra.mxu0 %v826
    %1725 = vmatprep.subr.mxu0 0.0
    %1726 = vmatpush1.msra.mxu0 %v827
    %1727 = vmatprep.subr.mxu0 0.0
    %1728 = vmatpush1.msra.mxu0 %v828
    %1729 = vmatprep.subr.mxu0 0.0
    %1730 = vmatpush1.msra.mxu0 %v829
    %1731 = vmatprep.subr.mxu0 0.0
    %1732 = vmatpush1.msra.mxu0 %v830
    %1733 = vmatprep.subr.mxu0 0.0
    %1734 = vmatpush1.msra.mxu0 %v831
    %1735 = vmatprep.subr.mxu0 0.0
    %1736 = vmatpush1.msra.mxu0 %v832
    %1737 = vmatprep.subr.mxu0 0.0
    %1738 = vmatpush1.msra.mxu0 %v833
    %1739 = vmatprep.subr.mxu0 0.0
    %1740 = vmatpush1.msra.mxu0 %v834
    %1741 = vmatprep.subr.mxu0 0.0
    %1742 = vmatpush1.msra.mxu0 %v835
    %1743 = vmatprep.subr.mxu0 0.0
    %1744 = vmatpush1.msra.mxu0 %v836
    %1745 = vmatprep.subr.mxu0 0.0
    %1746 = vmatpush1.msra.mxu0 %v837
    %1747 = vmatprep.subr.mxu0 0.0
    %1748 = vmatpush1.msra.mxu0 %v838
    %1749 = vmatprep.subr.mxu0 0.0
    %1750 = vmatpush1.msra.mxu0 %v839
    %1751 = vmatprep.subr.mxu0 0.0
    %1752 = vmatpush1.msra.mxu0 %v840
    %1753 = vmatprep.subr.mxu0 0.0
    %1754 = vmatpush1.msra.mxu0 %v841
    %1755 = vmatprep.subr.mxu0 0.0
    %1756 = vmatpush1.msra.mxu0 %v842
    %1757 = vmatprep.subr.mxu0 0.0
    %1758 = vmatpush1.msra.mxu0 %v843
    %1759 = vmatprep.subr.mxu0 0.0
    %1760 = vmatpush1.msra.mxu0 %v844
    %1761 = vmatprep.subr.mxu0 0.0
    %1762 = vmatpush1.msra.mxu0 %v845
    %1763 = vmatprep.subr.mxu0 0.0
    %1764 = vmatpush1.msra.mxu0 %v846
    %1765 = vmatprep.subr.mxu0 0.0
    %1766 = vmatpush1.msra.mxu0 %v847
    %1767 = vmatprep.subr.mxu0 0.0
    %1768 = vmatpush1.msra.mxu0 %v848
    %1769 = vmatprep.subr.mxu0 0.0
    %1770 = vmatpush1.msra.mxu0 %v849
    %1771 = vmatprep.subr.mxu0 0.0
    %1772 = vmatpush1.msra.mxu0 %v850
    %1773 = vmatprep.subr.mxu0 0.0
    %1774 = vmatpush1.msra.mxu0 %v851
    %1775 = vmatprep.subr.mxu0 0.0
    %1776 = vmatpush1.msra.mxu0 %v852
    %1777 = vmatprep.subr.mxu0 0.0
    %1778 = vmatpush1.msra.mxu0 %v853
    %1779 = vmatprep.subr.mxu0 0.0
    %1780 = vmatpush1.msra.mxu0 %v854
    %1781 = vmatprep.subr.mxu0 0.0
    %1782 = vmatpush1.msra.mxu0 %v855
    %1783 = vmatprep.subr.mxu0 0.0
    %1784 = vmatpush1.msra.mxu0 %v856
    %1785 = vmatprep.subr.mxu0 0.0
    %1786 = vmatpush1.msra.mxu0 %v857
    %1787 = vmatprep.mubr.f32.mxu0 %v81
    %1788 = vmatmul.mubr.f32.gmra.mrb[0].mxu0 %v80
    %v1789 = vpop.f32.mrb[0].mxu0
    %v1790 = vadd.f32 %v1720, %v1789
    %v1791 = vpop.f32.mrb[0].mxu0
    %1792 = vdwg.mxu0
    %1793 = vmatprep.subr.mxu0 0.0
    %1794 = vmatpush1.msra.mxu0 %v858
    %1795 = vmatprep.subr.mxu0 0.0
    %1796 = vmatpush1.msra.mxu0 %v859
    %1797 = vmatprep.subr.mxu0 0.0
    %1798 = vmatpush1.msra.mxu0 %v860
    %1799 = vmatprep.subr.mxu0 0.0
    %1800 = vmatpush1.msra.mxu0 %v861
    %1801 = vmatprep.subr.mxu0 0.0
    %1802 = vmatpush1.msra.mxu0 %v862
    %1803 = vmatprep.subr.mxu0 0.0
    %1804 = vmatpush1.msra.mxu0 %v863
    %1805 = vmatprep.subr.mxu0 0.0
    %1806 = vmatpush1.msra.mxu0 %v864
    %1807 = vmatprep.subr.mxu0 0.0
    %1808 = vmatpush1.msra.mxu0 %v865
    %1809 = vmatprep.subr.mxu0 0.0
    %1810 = vmatpush1.msra.mxu0 %v866
    %1811 = vmatprep.subr.mxu0 0.0
    %1812 = vmatpush1.msra.mxu0 %v867
    %1813 = vmatprep.subr.mxu0 0.0
    %1814 = vmatpush1.msra.mxu0 %v868
    %1815 = vmatprep.subr.mxu0 0.0
    %1816 = vmatpush1.msra.mxu0 %v869
    %1817 = vmatprep.subr.mxu0 0.0
    %1818 = vmatpush1.msra.mxu0 %v870
    %1819 = vmatprep.subr.mxu0 0.0
    %1820 = vmatpush1.msra.mxu0 %v871
    %1821 = vmatprep.subr.mxu0 0.0
    %1822 = vmatpush1.msra.mxu0 %v872
    %1823 = vmatprep.subr.mxu0 0.0
    %1824 = vmatpush1.msra.mxu0 %v873
    %1825 = vmatprep.subr.mxu0 0.0
    %1826 = vmatpush1.msra.mxu0 %v874
    %1827 = vmatprep.subr.mxu0 0.0
    %1828 = vmatpush1.msra.mxu0 %v875
    %1829 = vmatprep.subr.mxu0 0.0
    %1830 = vmatpush1.msra.mxu0 %v876
    %1831 = vmatprep.subr.mxu0 0.0
    %1832 = vmatpush1.msra.mxu0 %v877
    %1833 = vmatprep.subr.mxu0 0.0
    %1834 = vmatpush1.msra.mxu0 %v878
    %1835 = vmatprep.subr.mxu0 0.0
    %1836 = vmatpush1.msra.mxu0 %v879
    %1837 = vmatprep.subr.mxu0 0.0
    %1838 = vmatpush1.msra.mxu0 %v880
    %1839 = vmatprep.subr.mxu0 0.0
    %1840 = vmatpush1.msra.mxu0 %v881
    %1841 = vmatprep.subr.mxu0 0.0
    %1842 = vmatpush1.msra.mxu0 %v882
    %1843 = vmatprep.subr.mxu0 0.0
    %1844 = vmatpush1.msra.mxu0 %v883
    %1845 = vmatprep.subr.mxu0 0.0
    %1846 = vmatpush1.msra.mxu0 %v884
    %1847 = vmatprep.subr.mxu0 0.0
    %1848 = vmatpush1.msra.mxu0 %v885
    %1849 = vmatprep.subr.mxu0 0.0
    %1850 = vmatpush1.msra.mxu0 %v886
    %1851 = vmatprep.subr.mxu0 0.0
    %1852 = vmatpush1.msra.mxu0 %v887
    %1853 = vmatprep.subr.mxu0 0.0
    %1854 = vmatpush1.msra.mxu0 %v888
    %1855 = vmatprep.subr.mxu0 0.0
    %1856 = vmatpush1.msra.mxu0 %v889
    %1857 = vmatprep.mubr.f32.mxu0 %v83
    %1858 = vmatmul.mubr.f32.gmra.mrb[0].mxu0 %v82
    %v1859 = vpop.f32.mrb[0].mxu0
    %v1860 = vadd.f32 %v1790, %v1859
    %v1861 = vpop.f32.mrb[0].mxu0
    %1862 = vdwg.mxu0
    %1863 = vmatprep.subr.mxu0 0.0
    %1864 = vmatpush1.msra.mxu0 %v890
    %1865 = vmatprep.subr.mxu0 0.0
    %1866 = vmatpush1.msra.mxu0 %v891
    %1867 = vmatprep.subr.mxu0 0.0
    %1868 = vmatpush1.msra.mxu0 %v892
    %1869 = vmatprep.subr.mxu0 0.0
    %1870 = vmatpush1.msra.mxu0 %v893
    %1871 = vmatprep.subr.mxu0 0.0
    %1872 = vmatpush1.msra.mxu0 %v894
    %1873 = vmatprep.subr.mxu0 0.0
    %1874 = vmatpush1.msra.mxu0 %v895
    %1875 = vmatprep.subr.mxu0 0.0
    %1876 = vmatpush1.msra.mxu0 %v896
    %1877 = vmatprep.subr.mxu0 0.0
    %1878 = vmatpush1.msra.mxu0 %v897
    %1879 = vmatprep.subr.mxu0 0.0
    %1880 = vmatpush1.msra.mxu0 %v898
    %1881 = vmatprep.subr.mxu0 0.0
    %1882 = vmatpush1.msra.mxu0 %v899
    %1883 = vmatprep.subr.mxu0 0.0
    %1884 = vmatpush1.msra.mxu0 %v900
    %1885 = vmatprep.subr.mxu0 0.0
    %1886 = vmatpush1.msra.mxu0 %v901
    %1887 = vmatprep.subr.mxu0 0.0
    %1888 = vmatpush1.msra.mxu0 %v902
    %1889 = vmatprep.subr.mxu0 0.0
    %1890 = vmatpush1.msra.mxu0 %v903
    %1891 = vmatprep.subr.mxu0 0.0
    %1892 = vmatpush1.msra.mxu0 %v904
    %1893 = vmatprep.subr.mxu0 0.0
    %1894 = vmatpush1.msra.mxu0 %v905
    %1895 = vmatprep.subr.mxu0 0.0
    %1896 = vmatpush1.msra.mxu0 %v906
    %1897 = vmatprep.subr.mxu0 0.0
    %1898 = vmatpush1.msra.mxu0 %v907
    %1899 = vmatprep.subr.mxu0 0.0
    %1900 = vmatpush1.msra.mxu0 %v908
    %1901 = vmatprep.subr.mxu0 0.0
    %1902 = vmatpush1.msra.mxu0 %v909
    %1903 = vmatprep.subr.mxu0 0.0
    %1904 = vmatpush1.msra.mxu0 %v910
    %1905 = vmatprep.subr.mxu0 0.0
    %1906 = vmatpush1.msra.mxu0 %v911
    %1907 = vmatprep.subr.mxu0 0.0
    %1908 = vmatpush1.msra.mxu0 %v912
    %1909 = vmatprep.subr.mxu0 0.0
    %1910 = vmatpush1.msra.mxu0 %v913
    %1911 = vmatprep.subr.mxu0 0.0
    %1912 = vmatpush1.msra.mxu0 %v914
    %1913 = vmatprep.subr.mxu0 0.0
    %1914 = vmatpush1.msra.mxu0 %v915
    %1915 = vmatprep.subr.mxu0 0.0
    %1916 = vmatpush1.msra.mxu0 %v916
    %1917 = vmatprep.subr.mxu0 0.0
    %1918 = vmatpush1.msra.mxu0 %v917
    %1919 = vmatprep.subr.mxu0 0.0
    %1920 = vmatpush1.msra.mxu0 %v918
    %1921 = vmatprep.subr.mxu0 0.0
    %1922 = vmatpush1.msra.mxu0 %v919
    %1923 = vmatprep.subr.mxu0 0.0
    %1924 = vmatpush1.msra.mxu0 %v920
    %1925 = vmatprep.subr.mxu0 0.0
    %1926 = vmatpush1.msra.mxu0 %v921
    %1927 = vmatprep.mubr.f32.mxu0 %v85
    %1928 = vmatmul.mubr.f32.gmra.mrb[0].mxu0 %v84
    %v1929 = vpop.f32.mrb[0].mxu0
    %v1930 = vadd.f32 %v1860, %v1929
    %v1931 = vpop.f32.mrb[0].mxu0
    %1932 = vdwg.mxu0
    %1933 = vmatprep.subr.mxu0 0.0
    %1934 = vmatpush1.msra.mxu0 %v922
    %1935 = vmatprep.subr.mxu0 0.0
    %1936 = vmatpush1.msra.mxu0 %v923
    %1937 = vmatprep.subr.mxu0 0.0
    %1938 = vmatpush1.msra.mxu0 %v924
    %1939 = vmatprep.subr.mxu0 0.0
    %1940 = vmatpush1.msra.mxu0 %v925
    %1941 = vmatprep.subr.mxu0 0.0
    %1942 = vmatpush1.msra.mxu0 %v926
    %1943 = vmatprep.subr.mxu0 0.0
    %1944 = vmatpush1.msra.mxu0 %v927
    %1945 = vmatprep.subr.mxu0 0.0
    %1946 = vmatpush1.msra.mxu0 %v928
    %1947 = vmatprep.subr.mxu0 0.0
    %1948 = vmatpush1.msra.mxu0 %v929
    %1949 = vmatprep.subr.mxu0 0.0
    %1950 = vmatpush1.msra.mxu0 %v930
    %1951 = vmatprep.subr.mxu0 0.0
    %1952 = vmatpush1.msra.mxu0 %v931
    %1953 = vmatprep.subr.mxu0 0.0
    %1954 = vmatpush1.msra.mxu0 %v932
    %1955 = vmatprep.subr.mxu0 0.0
    %1956 = vmatpush1.msra.mxu0 %v933
    %1957 = vmatprep.subr.mxu0 0.0
    %1958 = vmatpush1.msra.mxu0 %v934
    %1959 = vmatprep.subr.mxu0 0.0
    %1960 = vmatpush1.msra.mxu0 %v935
    %1961 = vmatprep.subr.mxu0 0.0
    %1962 = vmatpush1.msra.mxu0 %v936
    %1963 = vmatprep.subr.mxu0 0.0
    %1964 = vmatpush1.msra.mxu0 %v937
    %1965 = vmatprep.subr.mxu0 0.0
    %1966 = vmatpush1.msra.mxu0 %v938
    %1967 = vmatprep.subr.mxu0 0.0
    %1968 = vmatpush1.msra.mxu0 %v939
    %1969 = vmatprep.subr.mxu0 0.0
    %1970 = vmatpush1.msra.mxu0 %v940
    %1971 = vmatprep.subr.mxu0 0.0
    %1972 = vmatpush1.msra.mxu0 %v941
    %1973 = vmatprep.subr.mxu0 0.0
    %1974 = vmatpush1.msra.mxu0 %v942
    %1975 = vmatprep.subr.mxu0 0.0
    %1976 = vmatpush1.msra.mxu0 %v943
    %1977 = vmatprep.subr.mxu0 0.0
    %1978 = vmatpush1.msra.mxu0 %v944
    %1979 = vmatprep.subr.mxu0 0.0
    %1980 = vmatpush1.msra.mxu0 %v945
    %1981 = vmatprep.subr.mxu0 0.0
    %1982 = vmatpush1.msra.mxu0 %v946
    %1983 = vmatprep.subr.mxu0 0.0
    %1984 = vmatpush1.msra.mxu0 %v947
    %1985 = vmatprep.subr.mxu0 0.0
    %1986 = vmatpush1.msra.mxu0 %v948
    %1987 = vmatprep.subr.mxu0 0.0
    %1988 = vmatpush1.msra.mxu0 %v949
    %1989 = vmatprep.subr.mxu0 0.0
    %1990 = vmatpush1.msra.mxu0 %v950
    %1991 = vmatprep.subr.mxu0 0.0
    %1992 = vmatpush1.msra.mxu0 %v951
    %1993 = vmatprep.subr.mxu0 0.0
    %1994 = vmatpush1.msra.mxu0 %v952
    %1995 = vmatprep.subr.mxu0 0.0
    %1996 = vmatpush1.msra.mxu0 %v953
    %1997 = vmatprep.mubr.f32.mxu0 %v87
    %1998 = vmatmul.mubr.f32.gmra.mrb[0].mxu0 %v86
    %v1999 = vpop.f32.mrb[0].mxu0
    %v2000 = vadd.f32 %v1930, %v1999
    %v2001 = vpop.f32.mrb[0].mxu0
    %2002 = vdwg.mxu0
    %2003 = vmatprep.subr.mxu0 0.0
    %2004 = vmatpush1.msra.mxu0 %v954
    %2005 = vmatprep.subr.mxu0 0.0
    %2006 = vmatpush1.msra.mxu0 %v955
    %2007 = vmatprep.subr.mxu0 0.0
    %2008 = vmatpush1.msra.mxu0 %v956
    %2009 = vmatprep.subr.mxu0 0.0
    %2010 = vmatpush1.msra.mxu0 %v957
    %2011 = vmatprep.subr.mxu0 0.0
    %2012 = vmatpush1.msra.mxu0 %v958
    %2013 = vmatprep.subr.mxu0 0.0
    %2014 = vmatpush1.msra.mxu0 %v959
    %2015 = vmatprep.subr.mxu0 0.0
    %2016 = vmatpush1.msra.mxu0 %v960
    %2017 = vmatprep.subr.mxu0 0.0
    %2018 = vmatpush1.msra.mxu0 %v961
    %2019 = vmatprep.subr.mxu0 0.0
    %2020 = vmatpush1.msra.mxu0 %v962
    %2021 = vmatprep.subr.mxu0 0.0
    %2022 = vmatpush1.msra.mxu0 %v963
    %2023 = vmatprep.subr.mxu0 0.0
    %2024 = vmatpush1.msra.mxu0 %v964
    %2025 = vmatprep.subr.mxu0 0.0
    %2026 = vmatpush1.msra.mxu0 %v965
    %2027 = vmatprep.subr.mxu0 0.0
    %2028 = vmatpush1.msra.mxu0 %v966
    %2029 = vmatprep.subr.mxu0 0.0
    %2030 = vmatpush1.msra.mxu0 %v967
    %2031 = vmatprep.subr.mxu0 0.0
    %2032 = vmatpush1.msra.mxu0 %v968
    %2033 = vmatprep.subr.mxu0 0.0
    %2034 = vmatpush1.msra.mxu0 %v969
    %2035 = vmatprep.subr.mxu0 0.0
    %2036 = vmatpush1.msra.mxu0 %v970
    %2037 = vmatprep.subr.mxu0 0.0
    %2038 = vmatpush1.msra.mxu0 %v971
    %2039 = vmatprep.subr.mxu0 0.0
    %2040 = vmatpush1.msra.mxu0 %v972
    %2041 = vmatprep.subr.mxu0 0.0
    %2042 = vmatpush1.msra.mxu0 %v973
    %2043 = vmatprep.subr.mxu0 0.0
    %2044 = vmatpush1.msra.mxu0 %v974
    %2045 = vmatprep.subr.mxu0 0.0
    %2046 = vmatpush1.msra.mxu0 %v975
    %2047 = vmatprep.subr.mxu0 0.0
    %2048 = vmatpush1.msra.mxu0 %v976
    %2049 = vmatprep.subr.mxu0 0.0
    %2050 = vmatpush1.msra.mxu0 %v977
    %2051 = vmatprep.subr.mxu0 0.0
    %2052 = vmatpush1.msra.mxu0 %v978
    %2053 = vmatprep.subr.mxu0 0.0
    %2054 = vmatpush1.msra.mxu0 %v979
    %2055 = vmatprep.subr.mxu0 0.0
    %2056 = vmatpush1.msra.mxu0 %v980
    %2057 = vmatprep.subr.mxu0 0.0
    %2058 = vmatpush1.msra.mxu0 %v981
    %2059 = vmatprep.subr.mxu0 0.0
    %2060 = vmatpush1.msra.mxu0 %v982
    %2061 = vmatprep.subr.mxu0 0.0
    %2062 = vmatpush1.msra.mxu0 %v983
    %2063 = vmatprep.subr.mxu0 0.0
    %2064 = vmatpush1.msra.mxu0 %v984
    %2065 = vmatprep.subr.mxu0 0.0
    %2066 = vmatpush1.msra.mxu0 %v985
    %2067 = vmatprep.mubr.f32.mxu0 %v89
    %2068 = vmatmul.mubr.f32.gmra.mrb[0].mxu0 %v88
    %v2069 = vpop.f32.mrb[0].mxu0
    %v2070 = vadd.f32 %v2000, %v2069
    %v2071 = vpop.f32.mrb[0].mxu0
    %2072 = vdwg.mxu0
    %2073 = vmatprep.subr.mxu0 0.0
    %2074 = vmatpush1.msra.mxu0 %v986
    %2075 = vmatprep.subr.mxu0 0.0
    %2076 = vmatpush1.msra.mxu0 %v987
    %2077 = vmatprep.subr.mxu0 0.0
    %2078 = vmatpush1.msra.mxu0 %v988
    %2079 = vmatprep.subr.mxu0 0.0
    %2080 = vmatpush1.msra.mxu0 %v989
    %2081 = vmatprep.subr.mxu0 0.0
    %2082 = vmatpush1.msra.mxu0 %v990
    %2083 = vmatprep.subr.mxu0 0.0
    %2084 = vmatpush1.msra.mxu0 %v991
    %2085 = vmatprep.subr.mxu0 0.0
    %2086 = vmatpush1.msra.mxu0 %v992
    %2087 = vmatprep.subr.mxu0 0.0
    %2088 = vmatpush1.msra.mxu0 %v993
    %2089 = vmatprep.subr.mxu0 0.0
    %2090 = vmatpush1.msra.mxu0 %v994
    %2091 = vmatprep.subr.mxu0 0.0
    %2092 = vmatpush1.msra.mxu0 %v995
    %2093 = vmatprep.subr.mxu0 0.0
    %2094 = vmatpush1.msra.mxu0 %v996
    %2095 = vmatprep.subr.mxu0 0.0
    %2096 = vmatpush1.msra.mxu0 %v997
    %2097 = vmatprep.subr.mxu0 0.0
    %2098 = vmatpush1.msra.mxu0 %v998
    %2099 = vmatprep.subr.mxu0 0.0
    %2100 = vmatpush1.msra.mxu0 %v999
    %2101 = vmatprep.subr.mxu0 0.0
    %2102 = vmatpush1.msra.mxu0 %v1000
    %2103 = vmatprep.subr.mxu0 0.0
    %2104 = vmatpush1.msra.mxu0 %v1001
    %2105 = vmatprep.subr.mxu0 0.0
    %2106 = vmatpush1.msra.mxu0 %v1002
    %2107 = vmatprep.subr.mxu0 0.0
    %2108 = vmatpush1.msra.mxu0 %v1003
    %2109 = vmatprep.subr.mxu0 0.0
    %2110 = vmatpush1.msra.mxu0 %v1004
    %2111 = vmatprep.subr.mxu0 0.0
    %2112 = vmatpush1.msra.mxu0 %v1005
    %2113 = vmatprep.subr.mxu0 0.0
    %2114 = vmatpush1.msra.mxu0 %v1006
    %2115 = vmatprep.subr.mxu0 0.0
    %2116 = vmatpush1.msra.mxu0 %v1007
    %2117 = vmatprep.subr.mxu0 0.0
    %2118 = vmatpush1.msra.mxu0 %v1008
    %2119 = vmatprep.subr.mxu0 0.0
    %2120 = vmatpush1.msra.mxu0 %v1009
    %2121 = vmatprep.subr.mxu0 0.0
    %2122 = vmatpush1.msra.mxu0 %v1010
    %2123 = vmatprep.subr.mxu0 0.0
    %2124 = vmatpush1.msra.mxu0 %v1011
    %2125 = vmatprep.subr.mxu0 0.0
    %2126 = vmatpush1.msra.mxu0 %v1012
    %2127 = vmatprep.subr.mxu0 0.0
    %2128 = vmatpush1.msra.mxu0 %v1013
    %2129 = vmatprep.subr.mxu0 0.0
    %2130 = vmatpush1.msra.mxu0 %v1014
    %2131 = vmatprep.subr.mxu0 0.0
    %2132 = vmatpush1.msra.mxu0 %v1015
    %2133 = vmatprep.subr.mxu0 0.0
    %2134 = vmatpush1.msra.mxu0 %v1016
    %2135 = vmatprep.subr.mxu0 0.0
    %2136 = vmatpush1.msra.mxu0 %v1017
    %2137 = vmatprep.mubr.f32.mxu0 %v91
    %2138 = vmatmul.mubr.f32.gmra.mrb[0].mxu0 %v90
    %v2139 = vpop.f32.mrb[0].mxu0
    %v2140 = vadd.f32 %v2070, %v2139
    %v2141 = vpop.f32.mrb[0].mxu0
    %2142 = vdwg.mxu0
    %v2143 = vmax.f32 %v2140, 0.0
    %v2144 = vld [vmem:[#allocation7 + $0x1410] sm:$0xff]
    %v2145 = vld [vmem:[#allocation7 + $0x1418] sm:$0xff]
    %v2146 = vld [vmem:[#allocation7 + $0x1420] sm:$0xff]
    %v2147 = vld [vmem:[#allocation7 + $0x1428] sm:$0xff]
    %v2148 = vld [vmem:[#allocation7 + $0x1430] sm:$0xff]
    %v2149 = vld [vmem:[#allocation7 + $0x1438] sm:$0xff]
    %v2150 = vld [vmem:[#allocation7 + $0x1440] sm:$0xff]
    %v2151 = vld [vmem:[#allocation7 + $0x1448] sm:$0xff]
    %v2152 = vld [vmem:[#allocation7 + $0x1450] sm:$0xff]
    %v2153 = vld [vmem:[#allocation7 + $0x1458] sm:$0xff]
    %v2154 = vld [vmem:[#allocation7 + $0x1460] sm:$0xff]
    %v2155 = vld [vmem:[#allocation7 + $0x1468] sm:$0xff]
    %v2156 = vld [vmem:[#allocation7 + $0x1470] sm:$0xff]
    %v2157 = vld [vmem:[#allocation7 + $0x1478] sm:$0xff]
    %v2158 = vld [vmem:[#allocation7 + $0x1480] sm:$0xff]
    %v2159 = vld [vmem:[#allocation7 + $0x1488] sm:$0xff]
    %v2160 = vld [vmem:[#allocation7 + $0x1490] sm:$0xff]
    %v2161 = vld [vmem:[#allocation7 + $0x1498] sm:$0xff]
    %v2162 = vld [vmem:[#allocation7 + $0x14a0] sm:$0xff]
    %v2163 = vld [vmem:[#allocation7 + $0x14a8] sm:$0xff]
    %v2164 = vld [vmem:[#allocation7 + $0x14b0] sm:$0xff]
    %v2165 = vld [vmem:[#allocation7 + $0x14b8] sm:$0xff]
    %v2166 = vld [vmem:[#allocation7 + $0x14c0] sm:$0xff]
    %v2167 = vld [vmem:[#allocation7 + $0x14c8] sm:$0xff]
    %v2168 = vld [vmem:[#allocation7 + $0x14d0] sm:$0xff]
    %v2169 = vld [vmem:[#allocation7 + $0x14d8] sm:$0xff]
    %v2170 = vld [vmem:[#allocation7 + $0x14e0] sm:$0xff]
    %v2171 = vld [vmem:[#allocation7 + $0x14e8] sm:$0xff]
    %v2172 = vld [vmem:[#allocation7 + $0x14f0] sm:$0xff]
    %v2173 = vld [vmem:[#allocation7 + $0x14f8] sm:$0xff]
    %v2174 = vld [vmem:[#allocation7 + $0x1500] sm:$0xff]
    %v2175 = vld [vmem:[#allocation7 + $0x1508] sm:$0xff]
    %2176 = vmatprep.subr.mxu0 0.0
    %2177 = vmatpush1.msra.mxu0 %v2160
    %2178 = vmatprep.subr.mxu0 0.0
    %2179 = vmatpush1.msra.mxu0 %v2161
    %2180 = vmatprep.subr.mxu0 0.0
    %2181 = vmatpush1.msra.mxu0 %v2162
    %2182 = vmatprep.subr.mxu0 0.0
    %2183 = vmatpush1.msra.mxu0 %v2163
    %2184 = vmatprep.subr.mxu0 0.0
    %2185 = vmatpush1.msra.mxu0 %v2164
    %2186 = vmatprep.subr.mxu0 0.0
    %2187 = vmatpush1.msra.mxu0 %v2165
    %2188 = vmatprep.subr.mxu0 0.0
    %2189 = vmatpush1.msra.mxu0 %v2166
    %2190 = vmatprep.subr.mxu0 0.0
    %2191 = vmatpush1.msra.mxu0 %v2167
    %2192 = vmatprep.subr.mxu0 0.0
    %2193 = vmatpush1.msra.mxu0 %v2168
    %2194 = vmatprep.subr.mxu0 0.0
    %2195 = vmatpush1.msra.mxu0 %v2169
    %2196 = vmatprep.subr.mxu0 0.0
    %2197 = vmatpush1.msra.mxu0 %v2170
    %2198 = vmatprep.subr.mxu0 0.0
    %2199 = vmatpush1.msra.mxu0 %v2171
    %2200 = vmatprep.subr.mxu0 0.0
    %2201 = vmatpush1.msra.mxu0 %v2172
    %2202 = vmatprep.subr.mxu0 0.0
    %2203 = vmatpush1.msra.mxu0 %v2173
    %2204 = vmatprep.subr.mxu0 0.0
    %2205 = vmatpush1.msra.mxu0 %v2174
    %2206 = vmatprep.subr.mxu0 0.0
    %2207 = vmatpush1.msra.mxu0 %v2175
    %2208 = vmatprep.subr.mxu0 0.0
    %2209 = vmatpush1.msra.mxu0 0.0
    %2210 = vmatprep.subr.mxu0 0.0
    %2211 = vmatpush1.msra.mxu0 0.0
    %2212 = vmatprep.subr.mxu0 0.0
    %2213 = vmatpush1.msra.mxu0 0.0
    %2214 = vmatprep.subr.mxu0 0.0
    %2215 = vmatpush1.msra.mxu0 0.0
    %2216 = vmatprep.subr.mxu0 0.0
    %2217 = vmatpush1.msra.mxu0 0.0
    %2218 = vmatprep.subr.mxu0 0.0
    %2219 = vmatpush1.msra.mxu0 0.0
    %2220 = vmatprep.subr.mxu0 0.0
    %2221 = vmatpush1.msra.mxu0 0.0
    %2222 = vmatprep.subr.mxu0 0.0
    %2223 = vmatpush1.msra.mxu0 0.0
    %2224 = vmatprep.subr.mxu0 0.0
    %2225 = vmatpush1.msra.mxu0 0.0
    %2226 = vmatprep.subr.mxu0 0.0
    %2227 = vmatpush1.msra.mxu0 0.0
    %2228 = vmatprep.subr.mxu0 0.0
    %2229 = vmatpush1.msra.mxu0 0.0
    %2230 = vmatprep.subr.mxu0 0.0
    %2231 = vmatpush1.msra.mxu0 0.0
    %2232 = vmatprep.subr.mxu0 0.0
    %2233 = vmatpush1.msra.mxu0 0.0
    %2234 = vmatprep.subr.mxu0 0.0
    %2235 = vmatpush1.msra.mxu0 0.0
    %2236 = vmatprep.subr.mxu0 0.0
    %2237 = vmatpush1.msra.mxu0 0.0
    %2238 = vmatprep.subr.mxu0 0.0
    %2239 = vmatpush1.msra.mxu0 0.0
    %2240 = vmatprep.mubr.f32.mxu0 0.0
    %2241 = vmatmul.mubr.f32.gmra.mrb[0].mxu0 %v2143
    %v2242 = vpop.f32.mrb[0].mxu0
    %v2243 = vadd.f32 0.0, %v2242
    %v2244 = vpop.f32.mrb[0].mxu0
    %2245 = vdwg.mxu0
    %2246 = vmatprep.subr.mxu0 0.0
    %2247 = vmatpush1.msra.mxu0 %v2144
    %2248 = vmatprep.subr.mxu0 0.0
    %2249 = vmatpush1.msra.mxu0 %v2145
    %2250 = vmatprep.subr.mxu0 0.0
    %2251 = vmatpush1.msra.mxu0 %v2146
    %2252 = vmatprep.subr.mxu0 0.0
    %2253 = vmatpush1.msra.mxu0 %v2147
    %2254 = vmatprep.subr.mxu0 0.0
    %2255 = vmatpush1.msra.mxu0 %v2148
    %2256 = vmatprep.subr.mxu0 0.0
    %2257 = vmatpush1.msra.mxu0 %v2149
    %2258 = vmatprep.subr.mxu0 0.0
    %2259 = vmatpush1.msra.mxu0 %v2150
    %2260 = vmatprep.subr.mxu0 0.0
    %2261 = vmatpush1.msra.mxu0 %v2151
    %2262 = vmatprep.subr.mxu0 0.0
    %2263 = vmatpush1.msra.mxu0 %v2152
    %2264 = vmatprep.subr.mxu0 0.0
    %2265 = vmatpush1.msra.mxu0 %v2153
    %2266 = vmatprep.subr.mxu0 0.0
    %2267 = vmatpush1.msra.mxu0 %v2154
    %2268 = vmatprep.subr.mxu0 0.0
    %2269 = vmatpush1.msra.mxu0 %v2155
    %2270 = vmatprep.subr.mxu0 0.0
    %2271 = vmatpush1.msra.mxu0 %v2156
    %2272 = vmatprep.subr.mxu0 0.0
    %2273 = vmatpush1.msra.mxu0 %v2157
    %2274 = vmatprep.subr.mxu0 0.0
    %2275 = vmatpush1.msra.mxu0 %v2158
    %2276 = vmatprep.subr.mxu0 0.0
    %2277 = vmatpush1.msra.mxu0 %v2159
    %2278 = vmatprep.subr.mxu0 0.0
    %2279 = vmatpush1.msra.mxu0 0.0
    %2280 = vmatprep.subr.mxu0 0.0
    %2281 = vmatpush1.msra.mxu0 0.0
    %2282 = vmatprep.subr.mxu0 0.0
    %2283 = vmatpush1.msra.mxu0 0.0
    %2284 = vmatprep.subr.mxu0 0.0
    %2285 = vmatpush1.msra.mxu0 0.0
    %2286 = vmatprep.subr.mxu0 0.0
    %2287 = vmatpush1.msra.mxu0 0.0
    %2288 = vmatprep.subr.mxu0 0.0
    %2289 = vmatpush1.msra.mxu0 0.0
    %2290 = vmatprep.subr.mxu0 0.0
    %2291 = vmatpush1.msra.mxu0 0.0
    %2292 = vmatprep.subr.mxu0 0.0
    %2293 = vmatpush1.msra.mxu0 0.0
    %2294 = vmatprep.subr.mxu0 0.0
    %2295 = vmatpush1.msra.mxu0 0.0
    %2296 = vmatprep.subr.mxu0 0.0
    %2297 = vmatpush1.msra.mxu0 0.0
    %2298 = vmatprep.subr.mxu0 0.0
    %2299 = vmatpush1.msra.mxu0 0.0
    %2300 = vmatprep.subr.mxu0 0.0
    %2301 = vmatpush1.msra.mxu0 0.0
    %2302 = vmatprep.subr.mxu0 0.0
    %2303 = vmatpush1.msra.mxu0 0.0
    %2304 = vmatprep.subr.mxu0 0.0
    %2305 = vmatpush1.msra.mxu0 0.0
    %2306 = vmatprep.subr.mxu0 0.0
    %2307 = vmatpush1.msra.mxu0 0.0
    %2308 = vmatprep.subr.mxu0 0.0
    %2309 = vmatpush1.msra.mxu0 0.0
    %2310 = vmatprep.mubr.f32.mxu0 0.0
    %2311 = vmatmul.mubr.f32.gmra.mrb[0].mxu0 %v505
    %v2312 = vpop.f32.mrb[0].mxu0
    %v2313 = vadd.f32 %v2243, %v2312
    %v2314 = vpop.f32.mrb[0].mxu0
    %2315 = vdwg.mxu0
    %v2316 = vld [vmem:[#allocation7 + $0x1510] sm:$0x1]
    %v2317 = vlaneseq
    %v2318 = vshrl.u32 %v2317, 7
    %v2319 = vsub.s32 0, %v2318
    %v2320 = vrot.slane %v2316, %v2319
    %v2321 = vadd.f32 %v2313, %v2320
    %v2322 = vmax.f32 %v2321, 0.0
    %v2323 = vld [vmem:[#allocation7 + $0x1518] sm:$0xff]
    %v2324 = vld [vmem:[#allocation7 + $0x1520] sm:$0xff]
    %v2325 = vld [vmem:[#allocation7 + $0x1528] sm:$0xff]
    %v2326 = vld [vmem:[#allocation7 + $0x1530] sm:$0xff]
    %v2327 = vld [vmem:[#allocation7 + $0x1538] sm:$0xff]
    %v2328 = vld [vmem:[#allocation7 + $0x1540] sm:$0xff]
    %v2329 = vld [vmem:[#allocation7 + $0x1548] sm:$0xff]
    %v2330 = vld [vmem:[#allocation7 + $0x1550] sm:$0xff]
    %v2331 = vld [vmem:[#allocation7 + $0x1558] sm:$0xff]
    %v2332 = vld [vmem:[#allocation7 + $0x1560] sm:$0xff]
    %v2333 = vld [vmem:[#allocation7 + $0x1568] sm:$0xff]
    %v2334 = vld [vmem:[#allocation7 + $0x1570] sm:$0xff]
    %v2335 = vld [vmem:[#allocation7 + $0x1578] sm:$0xff]
    %v2336 = vld [vmem:[#allocation7 + $0x1580] sm:$0xff]
    %v2337 = vld [vmem:[#allocation7 + $0x1588] sm:$0xff]
    %v2338 = vld [vmem:[#allocation7 + $0x1590] sm:$0xff]
    %v2339 = vld [vmem:[#allocation7 + $0x1598] sm:$0x1]
    %v2340 = vlaneseq
    %v2341 = vshrl.u32 %v2340, 7
    %v2342 = vsub.s32 0, %v2341
    %v2343 = vrot.slane %v2339, %v2342
    %2344 = vmatprep.subr.mxu0 0.0
    %2345 = vmatpush1.msra.mxu0 %v2323
    %2346 = vmatprep.subr.mxu0 0.0
    %2347 = vmatpush1.msra.mxu0 %v2324
    %2348 = vmatprep.subr.mxu0 0.0
    %2349 = vmatpush1.msra.mxu0 %v2325
    %2350 = vmatprep.subr.mxu0 0.0
    %2351 = vmatpush1.msra.mxu0 %v2326
    %2352 = vmatprep.subr.mxu0 0.0
    %2353 = vmatpush1.msra.mxu0 %v2327
    %2354 = vmatprep.subr.mxu0 0.0
    %2355 = vmatpush1.msra.mxu0 %v2328
    %2356 = vmatprep.subr.mxu0 0.0
    %2357 = vmatpush1.msra.mxu0 %v2329
    %2358 = vmatprep.subr.mxu0 0.0
    %2359 = vmatpush1.msra.mxu0 %v2330
    %2360 = vmatprep.subr.mxu0 0.0
    %2361 = vmatpush1.msra.mxu0 %v2331
    %2362 = vmatprep.subr.mxu0 0.0
    %2363 = vmatpush1.msra.mxu0 %v2332
    %2364 = vmatprep.subr.mxu0 0.0
    %2365 = vmatpush1.msra.mxu0 %v2333
    %2366 = vmatprep.subr.mxu0 0.0
    %2367 = vmatpush1.msra.mxu0 %v2334
    %2368 = vmatprep.subr.mxu0 0.0
    %2369 = vmatpush1.msra.mxu0 %v2335
    %2370 = vmatprep.subr.mxu0 0.0
    %2371 = vmatpush1.msra.mxu0 %v2336
    %2372 = vmatprep.subr.mxu0 0.0
    %2373 = vmatpush1.msra.mxu0 %v2337
    %2374 = vmatprep.subr.mxu0 0.0
    %2375 = vmatpush1.msra.mxu0 %v2338
    %2376 = vmatprep.subr.mxu0 0.0
    %2377 = vmatpush1.msra.mxu0 0.0
    %2378 = vmatprep.subr.mxu0 0.0
    %2379 = vmatpush1.msra.mxu0 0.0
    %2380 = vmatprep.subr.mxu0 0.0
    %2381 = vmatpush1.msra.mxu0 0.0
    %2382 = vmatprep.subr.mxu0 0.0
    %2383 = vmatpush1.msra.mxu0 0.0
    %2384 = vmatprep.subr.mxu0 0.0
    %2385 = vmatpush1.msra.mxu0 0.0
    %2386 = vmatprep.subr.mxu0 0.0
    %2387 = vmatpush1.msra.mxu0 0.0
    %2388 = vmatprep.subr.mxu0 0.0
    %2389 = vmatpush1.msra.mxu0 0.0
    %2390 = vmatprep.subr.mxu0 0.0
    %2391 = vmatpush1.msra.mxu0 0.0
    %2392 = vmatprep.subr.mxu0 0.0
    %2393 = vmatpush1.msra.mxu0 0.0
    %2394 = vmatprep.subr.mxu0 0.0
    %2395 = vmatpush1.msra.mxu0 0.0
    %2396 = vmatprep.subr.mxu0 0.0
    %2397 = vmatpush1.msra.mxu0 0.0
    %2398 = vmatprep.subr.mxu0 0.0
    %2399 = vmatpush1.msra.mxu0 0.0
    %2400 = vmatprep.subr.mxu0 0.0
    %2401 = vmatpush1.msra.mxu0 0.0
    %2402 = vmatprep.subr.mxu0 0.0
    %2403 = vmatpush1.msra.mxu0 0.0
    %2404 = vmatprep.subr.mxu0 0.0
    %2405 = vmatpush1.msra.mxu0 0.0
    %2406 = vmatprep.subr.mxu0 0.0
    %2407 = vmatpush1.msra.mxu0 0.0
    %2408 = vmatprep.mubr.f32.mxu0 0.0
    %2409 = vmatmul.mubr.f32.gmra.mrb[0].mxu0 %v2322
    %v2410 = vpop.f32.mrb[0].mxu0
    %v2411 = vadd.f32 %v2343, %v2410
    %v2412 = vpop.f32.mrb[0].mxu0
    %2413 = vdwg.mxu0
    %2414 = vst [vmem:[#allocation8] sm:$0xff] %v2411
    // Predicated region
    $region26: #{tpu_custom_call.1} parent=1 // pred_check
      _
    $region27: #{tpu_custom_call.1} parent=1 // pred_check_branch
      %2416 = sbr.rel (0) target = $region29
    $region28: #{tpu_custom_call.1} parent=1 // pred_region
      %s2418 = ssub.s32 128, 128
      %2419 = vsyncadd [#allocation4], %s2418
      %s2421 = sshll.u32 [#allocation8], 4
      %s2422 = int_to_ptr.vmem [resolvable:$true] %s2421
      %2424 = dma.vmem_to_hbm [thread:$0]  %s2422, 128, %s3, [#allocation4]
    $region29: #{tpu_custom_call.1} parent=1 // pred_fallthru
      _
    // Predicated region
    $region30: #{tpu_custom_call.1} parent=1 // pred_check
      _
    $region31: #{tpu_custom_call.1} parent=1 // pred_check_branch
      %2426 = sbr.rel (0) target = $region33
    $region32: #{tpu_custom_call.1} parent=1 // pred_region
      %2427 = dma.done [#allocation4], 128
    $region33: #{tpu_custom_call.1} parent=1 // pred_fallthru
      _
    %2428 = vsyncpa [#allocation3], 1
    %2429 = vsyncpa [#allocation6], 1
    %2430 = vsyncpa [#allocation4], 1

</llo_original>
